<compile_context>
chip_gen: v7x
topology: tpu7x:2x2x1
jax: 0.10.0
libtpu: 0.0.40
codegen_flags: <defaults>
</compile_context>

<pallas_src>
import functools

import jax
import jax.numpy as jnp
from jax.experimental import pallas as pl
from jax.experimental.pallas import tpu as pltpu


# ---------------------------------------------------------------------------
# Fused matmul (+ bias + optional ReLU + optional residual) Pallas kernels.
# ---------------------------------------------------------------------------

def _matmul_bias_act_kernel(w_ref, p_ref, b_ref, o_ref, *, relu):
    w = w_ref[...].astype(jnp.float32)          # bf16 weights upcast in-kernel
    acc = jnp.dot(w, p_ref[...], preferred_element_type=jnp.float32)
    acc = acc + b_ref[...]
    if relu:
        acc = jnp.maximum(acc, 0.0)
    o_ref[...] = acc.astype(o_ref.dtype)


def _matmul_bias_act_res_kernel(w_ref, p_ref, b_ref, r_ref, o_ref, *, relu):
    w = w_ref[...].astype(jnp.float32)
    acc = jnp.dot(w, p_ref[...], preferred_element_type=jnp.float32)
    acc = acc + b_ref[...]
    if relu:
        acc = jnp.maximum(acc, 0.0)
    acc = acc + r_ref[...]                      # residual add (f32) after ReLU
    o_ref[...] = acc.astype(o_ref.dtype)


def fused_matmul(w_mat, p, b_col, *, relu, residual=None):
    """(M,K) @ (K,N) + bias (+residual), bias/ReLU fused in the epilogue."""
    M, K = w_mat.shape
    K2, N = p.shape
    assert K == K2, (K, K2)

    # Lane-dense output tiles; >= 2 blocks on the parallel axis when possible
    # so both TensorCores on v7x stream disjoint halves of the work.
    if N % 256 == 0:
        tn = 256
    elif N % 128 == 0:
        tn = 128
    else:
        tn = N
    assert N % tn == 0
    grid = (N // tn,)

    in_specs = [
        pl.BlockSpec((M, K), lambda j: (0, 0)),    # weights (bf16, resident)
        pl.BlockSpec((K, tn), lambda j: (0, j)),   # im2col patches (f32)
        pl.BlockSpec((M, 1), lambda j: (0, 0)),    # bias column (f32)
    ]
    args = [w_mat, p.astype(jnp.float32), b_col.astype(jnp.float32)]
    if residual is not None:
        in_specs.append(pl.BlockSpec((M, tn), lambda j: (0, j)))
        args.append(residual.astype(jnp.float32))
        kernel = functools.partial(_matmul_bias_act_res_kernel, relu=relu)
    else:
        kernel = functools.partial(_matmul_bias_act_kernel, relu=relu)

    return pl.pallas_call(
        kernel,
        out_shape=jax.ShapeDtypeStruct((M, N), jnp.float32),
        grid_spec=pltpu.PrefetchScalarGridSpec(
            num_scalar_prefetch=0,
            grid=grid,
            in_specs=in_specs,
            out_specs=pl.BlockSpec((M, tn), lambda j: (0, j)),
        ),
        compiler_params=pltpu.CompilerParams(
            dimension_semantics=("parallel",),
            vmem_limit_bytes=32 * 1024 * 1024,
        ),
    )(*args)


# ---------------------------------------------------------------------------
# Layout helpers (zero-FLOP reshapes done in JAX around the Pallas kernels).
# ---------------------------------------------------------------------------

def _im2col_3x3(x_cbhw):
    """(C,B,H,W) -> (9*C, B*H*W) patches for a 3x3 'same' conv (zero pad)."""
    C, B, H, W = x_cbhw.shape
    xp = jnp.pad(x_cbhw, ((0, 0), (0, 0), (1, 1), (1, 1)))
    taps = [xp[:, :, dy:dy + H, dx:dx + W]
            for dy in range(3) for dx in range(3)]           # each (C,B,H,W)
    return jnp.stack(taps, axis=0).reshape(9 * C, B * H * W)


def conv3x3_bn_relu(x_cbhw, blk, residual=None):
    """Fused Conv3x3 + folded BN + ReLU (+ residual) -> one Pallas call."""
    C, B, H, W = x_cbhw.shape
    cout = blk["w_mat"].shape[0]
    p = _im2col_3x3(x_cbhw)
    r = None if residual is None else residual.reshape(cout, B * H * W)
    y = fused_matmul(blk["w_mat"], p, blk["b_col"], relu=True, residual=r)
    return y.reshape(cout, B, H, W)


def conv_transpose_2x2(x_cbhw, up):
    """ConvTranspose2d(k=2, s=2): matmul in Pallas, pixel interleave in JAX."""
    C, B, H, W = x_cbhw.shape
    cout = up["w_mat"].shape[0] // 4
    y4 = fused_matmul(up["w_mat"], x_cbhw.reshape(C, B * H * W),
                      up["b_col"], relu=False)               # (4*Cout, B*H*W)
    y = (y4.reshape(2, 2, cout, B, H, W)
           .transpose(2, 3, 4, 0, 5, 1)
           .reshape(cout, B, 2 * H, 2 * W))
    return y


def maxpool_2x2(x_cbhw):
    C, B, H, W = x_cbhw.shape
    return x_cbhw.reshape(C, B, H // 2, 2, W // 2, 2).max(axis=(3, 5))


# ---------------------------------------------------------------------------
# Parameter construction (deterministic synthetic weights, BN folded).
# ---------------------------------------------------------------------------

def _fold_bn(w, b, gamma, beta, mean, var, eps=1e-5):
    scale = gamma / jnp.sqrt(var + eps)
    return w * scale[:, None, None, None], (b - mean) * scale + beta


def init_basic_block(key, cin, cout):
    kw, kb, kg, kbe, km, kv = jax.random.split(key, 6)
    bound = 1.0 / float((cin * 9) ** 0.5)
    w = jax.random.uniform(kw, (cout, cin, 3, 3), jnp.float32, -bound, bound)
    b = jax.random.uniform(kb, (cout,), jnp.float32, -bound, bound)
    gamma = 1.0 + 0.1 * jax.random.normal(kg, (cout,), jnp.float32)
    beta = 0.1 * jax.random.normal(kbe, (cout,), jnp.float32)
    mean = 0.1 * jax.random.normal(km, (cout,), jnp.float32)
    var = jnp.abs(1.0 + 0.1 * jax.random.normal(kv, (cout,), jnp.float32))
    w_f, b_f = _fold_bn(w, b, gamma, beta, mean, var)
    w_q = w_f.astype(jnp.bfloat16)                 # weights streamed as bf16
    w_mat = jnp.transpose(w_q, (0, 2, 3, 1)).reshape(cout, 9 * cin)
    return dict(
        w_mat=w_mat,                               # (Cout, 9*Cin) bf16
        b_col=b_f.reshape(cout, 1),                # (Cout, 1) f32
        w_ref=w_q.astype(jnp.float32),             # (Cout, Cin, 3, 3) reference
        b_ref=b_f,
    )


def init_conv_transpose(key, cin, cout):
    kw, kb = jax.random.split(key)
    bound = 1.0 / float((cin * 4) ** 0.5)
    w = jax.random.uniform(kw, (cin, cout, 2, 2), jnp.float32, -bound, bound)
    b = jax.random.uniform(kb, (cout,), jnp.float32, -bound, bound)
    w_q = w.astype(jnp.bfloat16)
    w_mat = jnp.transpose(w_q, (2, 3, 1, 0)).reshape(4 * cout, cin)
    return dict(
        w_mat=w_mat,                               # (4*Cout, Cin) bf16
        b_col=jnp.tile(b, 4).reshape(4 * cout, 1), # (4*Cout, 1) f32
        w_ref=w_q.astype(jnp.float32),             # (Cin, Cout, 2, 2) reference
        b_ref=b,
    )


def init_rsu4_params(key, in_ch=3, mid_ch=12, out_ch=3):
    ks = jax.random.split(key, 10)
    return dict(
        first_conv=init_basic_block(ks[0], in_ch, out_ch),
        block1=init_basic_block(ks[1], out_ch, mid_ch),
        block2=init_basic_block(ks[2], mid_ch, mid_ch),
        block3=init_basic_block(ks[3], mid_ch, mid_ch),
        block4=init_basic_block(ks[4], mid_ch, mid_ch),
        block3d=init_basic_block(ks[5], 2 * mid_ch, mid_ch),
        up3=init_conv_transpose(ks[6], mid_ch, mid_ch),
        block2d=init_basic_block(ks[7], 2 * mid_ch, mid_ch),
        up2=init_conv_transpose(ks[8], mid_ch, mid_ch),
        block1d=init_basic_block(ks[9], 2 * mid_ch, out_ch),
    )


# ---------------------------------------------------------------------------
# RSU4 forward (Pallas) and pure-XLA reference.
# ---------------------------------------------------------------------------

def rsu4_forward(x_nchw, params):
    """RSU4.forward: (B, in_ch, H, W) -> (B, out_ch, H, W)."""
    x = jnp.transpose(x_nchw.astype(jnp.float32), (1, 0, 2, 3))   # -> CBHW

    hx_in = conv3x3_bn_relu(x, params["first_conv"])
    hx1 = conv3x3_bn_relu(hx_in, params["block1"])
    hx = maxpool_2x2(hx1)
    hx2 = conv3x3_bn_relu(hx, params["block2"])
    hx = maxpool_2x2(hx2)
    hx3 = conv3x3_bn_relu(hx, params["block3"])
    hx4 = conv3x3_bn_relu(hx3, params["block4"])
    hx3d = conv3x3_bn_relu(jnp.concatenate([hx4, hx3], axis=0),
                           params["block3d"])
    hx3dup = conv_transpose_2x2(hx3d, params["up3"])
    hx2d = conv3x3_bn_relu(jnp.concatenate([hx3dup, hx2], axis=0),
                           params["block2d"])
    hx2dup = conv_transpose_2x2(hx2d, params["up2"])
    # Final block: ReLU epilogue + residual add of hx_in fused in the kernel.
    hx1d = conv3x3_bn_relu(jnp.concatenate([hx2dup, hx1], axis=0),
                           params["block1d"], residual=hx_in)
    return jnp.transpose(hx1d, (1, 0, 2, 3))                      # -> NCHW


def rsu4_reference(x, params):
    """Pure-XLA reference using the same bf16-rounded folded weights (NCHW)."""
    hi = jax.lax.Precision.HIGHEST

    def cbr(h, p):
        y = jax.lax.conv_general_dilated(
            h, p["w_ref"], window_strides=(1, 1), padding=((1, 1), (1, 1)),
            dimension_numbers=("NCHW", "OIHW", "NCHW"), precision=hi)
        return jnp.maximum(y + p["b_ref"][None, :, None, None], 0.0)

    def pool(h):
        b, c, hh, ww = h.shape
        return h.reshape(b, c, hh // 2, 2, ww // 2, 2).max(axis=(3, 5))

    def up(h, p):
        b, c, hh, ww = h.shape
        cout = p["w_ref"].shape[1]
        y = jnp.einsum("bchw,cdij->bdhiwj", h, p["w_ref"], precision=hi)
        return (y.reshape(b, cout, 2 * hh, 2 * ww)
                + p["b_ref"][None, :, None, None])

    hx_in = cbr(x, params["first_conv"])
    hx1 = cbr(hx_in, params["block1"])
    hx2 = cbr(pool(hx1), params["block2"])
    hx3 = cbr(pool(hx2), params["block3"])
    hx4 = cbr(hx3, params["block4"])
    hx3d = cbr(jnp.concatenate([hx4, hx3], axis=1), params["block3d"])
    hx3dup = up(hx3d, params["up3"])
    hx2d = cbr(jnp.concatenate([hx3dup, hx2], axis=1), params["block2d"])
    hx2dup = up(hx2d, params["up2"])
    hx1d = cbr(jnp.concatenate([hx2dup, hx1], axis=1), params["block1d"])
    return hx1d + hx_in


if __name__ == "__main__":
    key = jax.random.PRNGKey(0)
    k_in, k_par = jax.random.split(key)

    B, IN_CH, MID_CH, OUT_CH, H, W = 2, 3, 12, 3, 16, 16
    x = jax.random.normal(k_in, (B, IN_CH, H, W), dtype=jnp.float32)
    params = init_rsu4_params(k_par, in_ch=IN_CH, mid_ch=MID_CH, out_ch=OUT_CH)

    fwd = jax.jit(rsu4_forward)
    out = jax.block_until_ready(fwd(x, params))

    assert out.shape == (B, OUT_CH, H, W), out.shape
    assert bool(jnp.all(jnp.isfinite(out)))

    ref = jax.block_until_ready(rsu4_reference(x, params))
    assert bool(jnp.allclose(out, ref, atol=2e-2, rtol=2e-2)), (
        float(jnp.max(jnp.abs(out - ref))))

    print("KERNEL_OK")
</pallas_src>

<mosaic_0001>
module attributes {stable_mosaic.version = 11 : i64} {
  func.func @_matmul_bias_act_kernel(%arg0: i32, %arg1: memref<3x27xbf16, #tpu.memory_space<vmem>>, %arg2: memref<27x256xf32, #tpu.memory_space<vmem>>, %arg3: memref<3x1xf32, #tpu.memory_space<vmem>>, %arg4: memref<3x256xf32, #tpu.memory_space<vmem>>) attributes {dimension_semantics = [#tpu.dimension_semantics<parallel>], iteration_bounds = array<i64: 2>, scalar_prefetch = 0 : i64, scratch_operands = 0 : i64, tpu.core_type = #tpu.core_type<tc>, window_params = [{pipeline_mode = #tpu.pipeline_mode<synchronous>, transform_indices = @transform_0, window_bounds = array<i64: 3, 27>}, {transform_indices = @transform_1, window_bounds = array<i64: 27, 256>}, {pipeline_mode = #tpu.pipeline_mode<synchronous>, transform_indices = @transform_2, window_bounds = array<i64: 3, 1>}, {transform_indices = @transform_3, window_bounds = array<i64: 3, 256>}]} {
    %c0 = arith.constant 0 : index
    %c0_0 = arith.constant 0 : index
    %0 = vector.load %arg1[%c0, %c0_0] : memref<3x27xbf16, #tpu.memory_space<vmem>>, vector<3x27xbf16>
    %1 = arith.extf %0 : vector<3x27xbf16> to vector<3x27xf32>
    %c0_1 = arith.constant 0 : index
    %c0_2 = arith.constant 0 : index
    %2 = vector.load %arg2[%c0_1, %c0_2] : memref<27x256xf32, #tpu.memory_space<vmem>>, vector<27x256xf32>
    %cst = arith.constant dense<0.000000e+00> : vector<3x256xf32>
    %3 = tpu.matmul %1, %2, %cst {dimension_numbers = #tpu.dot_dimension_numbers<[1], [0], [0], [1], [0, 0, 1, 1], [], []>} : vector<3x27xf32>, vector<27x256xf32>, vector<3x256xf32> -> vector<3x256xf32>
    %c0_3 = arith.constant 0 : index
    %c0_4 = arith.constant 0 : index
    %4 = vector.load %arg3[%c0_3, %c0_4] : memref<3x1xf32, #tpu.memory_space<vmem>>, vector<3x1xf32>
    %5 = vector.broadcast %4 : vector<3x1xf32> to vector<3x256xf32>
    %6 = arith.addf %3, %5 : vector<3x256xf32>
    %cst_5 = arith.constant 0.000000e+00 : f32
    %7 = vector.broadcast %cst_5 : f32 to vector<3x256xf32>
    %8 = arith.maximumf %6, %7 : vector<3x256xf32>
    %c0_6 = arith.constant 0 : index
    %c0_7 = arith.constant 0 : index
    %9 = vector.load %arg4[%c0_6, %c0_7] : memref<3x256xf32, #tpu.memory_space<vmem>>, vector<3x256xf32>
    tpu.vector_store %arg4[%c0_6, %c0_7], %8 {strides = array<i32>} : memref<3x256xf32, #tpu.memory_space<vmem>>, vector<3x256xf32>,
    return
  }
  func.func @transform_0(%arg0: i32) -> (i32, i32) {
    %c0_i32 = arith.constant 0 : i32
    %c0_i32_0 = arith.constant 0 : i32
    %c0_i32_1 = arith.constant 0 : i32
    return %c0_i32, %c0_i32_0 : i32, i32
  }
  func.func @transform_1(%arg0: i32) -> (i32, i32) {
    %c0_i32 = arith.constant 0 : i32
    %c0_i32_0 = arith.constant 0 : i32
    return %c0_i32, %arg0 : i32, i32
  }
  func.func @transform_2(%arg0: i32) -> (i32, i32) {
    %c0_i32 = arith.constant 0 : i32
    %c0_i32_0 = arith.constant 0 : i32
    %c0_i32_1 = arith.constant 0 : i32
    return %c0_i32, %c0_i32_0 : i32, i32
  }
  func.func @transform_3(%arg0: i32) -> (i32, i32) {
    %c0_i32 = arith.constant 0 : i32
    %c0_i32_0 = arith.constant 0 : i32
    return %c0_i32, %arg0 : i32, i32
  }
}

module attributes {stable_mosaic.version = 11 : i64} {
  func.func @_matmul_bias_act_kernel(%arg0: i32, %arg1: memref<12x27xbf16, #tpu.memory_space<vmem>>, %arg2: memref<27x256xf32, #tpu.memory_space<vmem>>, %arg3: memref<12x1xf32, #tpu.memory_space<vmem>>, %arg4: memref<12x256xf32, #tpu.memory_space<vmem>>) attributes {dimension_semantics = [#tpu.dimension_semantics<parallel>], iteration_bounds = array<i64: 2>, scalar_prefetch = 0 : i64, scratch_operands = 0 : i64, tpu.core_type = #tpu.core_type<tc>, window_params = [{pipeline_mode = #tpu.pipeline_mode<synchronous>, transform_indices = @transform_0, window_bounds = array<i64: 12, 27>}, {transform_indices = @transform_1, window_bounds = array<i64: 27, 256>}, {pipeline_mode = #tpu.pipeline_mode<synchronous>, transform_indices = @transform_2, window_bounds = array<i64: 12, 1>}, {transform_indices = @transform_3, window_bounds = array<i64: 12, 256>}]} {
    %c0 = arith.constant 0 : index
    %c0_0 = arith.constant 0 : index
    %0 = vector.load %arg1[%c0, %c0_0] : memref<12x27xbf16, #tpu.memory_space<vmem>>, vector<12x27xbf16>
    %1 = arith.extf %0 : vector<12x27xbf16> to vector<12x27xf32>
    %c0_1 = arith.constant 0 : index
    %c0_2 = arith.constant 0 : index
    %2 = vector.load %arg2[%c0_1, %c0_2] : memref<27x256xf32, #tpu.memory_space<vmem>>, vector<27x256xf32>
    %cst = arith.constant dense<0.000000e+00> : vector<12x256xf32>
    %3 = tpu.matmul %1, %2, %cst {dimension_numbers = #tpu.dot_dimension_numbers<[1], [0], [0], [1], [0, 0, 1, 1], [], []>} : vector<12x27xf32>, vector<27x256xf32>, vector<12x256xf32> -> vector<12x256xf32>
    %c0_3 = arith.constant 0 : index
    %c0_4 = arith.constant 0 : index
    %4 = vector.load %arg3[%c0_3, %c0_4] : memref<12x1xf32, #tpu.memory_space<vmem>>, vector<12x1xf32>
    %5 = vector.broadcast %4 : vector<12x1xf32> to vector<12x256xf32>
    %6 = arith.addf %3, %5 : vector<12x256xf32>
    %cst_5 = arith.constant 0.000000e+00 : f32
    %7 = vector.broadcast %cst_5 : f32 to vector<12x256xf32>
    %8 = arith.maximumf %6, %7 : vector<12x256xf32>
    %c0_6 = arith.constant 0 : index
    %c0_7 = arith.constant 0 : index
    %9 = vector.load %arg4[%c0_6, %c0_7] : memref<12x256xf32, #tpu.memory_space<vmem>>, vector<12x256xf32>
    tpu.vector_store %arg4[%c0_6, %c0_7], %8 {strides = array<i32>} : memref<12x256xf32, #tpu.memory_space<vmem>>, vector<12x256xf32>,
    return
  }
  func.func @transform_0(%arg0: i32) -> (i32, i32) {
    %c0_i32 = arith.constant 0 : i32
    %c0_i32_0 = arith.constant 0 : i32
    %c0_i32_1 = arith.constant 0 : i32
    return %c0_i32, %c0_i32_0 : i32, i32
  }
  func.func @transform_1(%arg0: i32) -> (i32, i32) {
    %c0_i32 = arith.constant 0 : i32
    %c0_i32_0 = arith.constant 0 : i32
    return %c0_i32, %arg0 : i32, i32
  }
  func.func @transform_2(%arg0: i32) -> (i32, i32) {
    %c0_i32 = arith.constant 0 : i32
    %c0_i32_0 = arith.constant 0 : i32
    %c0_i32_1 = arith.constant 0 : i32
    return %c0_i32, %c0_i32_0 : i32, i32
  }
  func.func @transform_3(%arg0: i32) -> (i32, i32) {
    %c0_i32 = arith.constant 0 : i32
    %c0_i32_0 = arith.constant 0 : i32
    return %c0_i32, %arg0 : i32, i32
  }
}

module attributes {stable_mosaic.version = 11 : i64} {
  func.func @_matmul_bias_act_kernel(%arg0: i32, %arg1: memref<12x108xbf16, #tpu.memory_space<vmem>>, %arg2: memref<108x128xf32, #tpu.memory_space<vmem>>, %arg3: memref<12x1xf32, #tpu.memory_space<vmem>>, %arg4: memref<12x128xf32, #tpu.memory_space<vmem>>) attributes {dimension_semantics = [#tpu.dimension_semantics<parallel>], iteration_bounds = array<i64: 1>, scalar_prefetch = 0 : i64, scratch_operands = 0 : i64, tpu.core_type = #tpu.core_type<tc>, window_params = [{pipeline_mode = #tpu.pipeline_mode<synchronous>, transform_indices = @transform_0, window_bounds = array<i64: 12, 108>}, {transform_indices = @transform_1, window_bounds = array<i64: 108, 128>}, {pipeline_mode = #tpu.pipeline_mode<synchronous>, transform_indices = @transform_2, window_bounds = array<i64: 12, 1>}, {transform_indices = @transform_3, window_bounds = array<i64: 12, 128>}]} {
    %c0 = arith.constant 0 : index
    %c0_0 = arith.constant 0 : index
    %0 = vector.load %arg1[%c0, %c0_0] : memref<12x108xbf16, #tpu.memory_space<vmem>>, vector<12x108xbf16>
    %1 = arith.extf %0 : vector<12x108xbf16> to vector<12x108xf32>
    %c0_1 = arith.constant 0 : index
    %c0_2 = arith.constant 0 : index
    %2 = vector.load %arg2[%c0_1, %c0_2] : memref<108x128xf32, #tpu.memory_space<vmem>>, vector<108x128xf32>
    %cst = arith.constant dense<0.000000e+00> : vector<12x128xf32>
    %3 = tpu.matmul %1, %2, %cst {dimension_numbers = #tpu.dot_dimension_numbers<[1], [0], [0], [1], [0, 0, 1, 1], [], []>} : vector<12x108xf32>, vector<108x128xf32>, vector<12x128xf32> -> vector<12x128xf32>
    %c0_3 = arith.constant 0 : index
    %c0_4 = arith.constant 0 : index
    %4 = vector.load %arg3[%c0_3, %c0_4] : memref<12x1xf32, #tpu.memory_space<vmem>>, vector<12x1xf32>
    %5 = vector.broadcast %4 : vector<12x1xf32> to vector<12x128xf32>
    %6 = arith.addf %3, %5 : vector<12x128xf32>
    %cst_5 = arith.constant 0.000000e+00 : f32
    %7 = vector.broadcast %cst_5 : f32 to vector<12x128xf32>
    %8 = arith.maximumf %6, %7 : vector<12x128xf32>
    %c0_6 = arith.constant 0 : index
    %c0_7 = arith.constant 0 : index
    %9 = vector.load %arg4[%c0_6, %c0_7] : memref<12x128xf32, #tpu.memory_space<vmem>>, vector<12x128xf32>
    tpu.vector_store %arg4[%c0_6, %c0_7], %8 {strides = array<i32>} : memref<12x128xf32, #tpu.memory_space<vmem>>, vector<12x128xf32>,
    return
  }
  func.func @transform_0(%arg0: i32) -> (i32, i32) {
    %c0_i32 = arith.constant 0 : i32
    %c0_i32_0 = arith.constant 0 : i32
    %c0_i32_1 = arith.constant 0 : i32
    return %c0_i32, %c0_i32_0 : i32, i32
  }
  func.func @transform_1(%arg0: i32) -> (i32, i32) {
    %c0_i32 = arith.constant 0 : i32
    %c0_i32_0 = arith.constant 0 : i32
    return %c0_i32, %arg0 : i32, i32
  }
  func.func @transform_2(%arg0: i32) -> (i32, i32) {
    %c0_i32 = arith.constant 0 : i32
    %c0_i32_0 = arith.constant 0 : i32
    %c0_i32_1 = arith.constant 0 : i32
    return %c0_i32, %c0_i32_0 : i32, i32
  }
  func.func @transform_3(%arg0: i32) -> (i32, i32) {
    %c0_i32 = arith.constant 0 : i32
    %c0_i32_0 = arith.constant 0 : i32
    return %c0_i32, %arg0 : i32, i32
  }
}

module attributes {stable_mosaic.version = 11 : i64} {
  func.func @_matmul_bias_act_kernel(%arg0: i32, %arg1: memref<12x108xbf16, #tpu.memory_space<vmem>>, %arg2: memref<108x32xf32, #tpu.memory_space<vmem>>, %arg3: memref<12x1xf32, #tpu.memory_space<vmem>>, %arg4: memref<12x32xf32, #tpu.memory_space<vmem>>) attributes {dimension_semantics = [#tpu.dimension_semantics<parallel>], iteration_bounds = array<i64: 1>, scalar_prefetch = 0 : i64, scratch_operands = 0 : i64, tpu.core_type = #tpu.core_type<tc>, window_params = [{pipeline_mode = #tpu.pipeline_mode<synchronous>, transform_indices = @transform_0, window_bounds = array<i64: 12, 108>}, {transform_indices = @transform_1, window_bounds = array<i64: 108, 32>}, {pipeline_mode = #tpu.pipeline_mode<synchronous>, transform_indices = @transform_2, window_bounds = array<i64: 12, 1>}, {transform_indices = @transform_3, window_bounds = array<i64: 12, 32>}]} {
    %c0 = arith.constant 0 : index
    %c0_0 = arith.constant 0 : index
    %0 = vector.load %arg1[%c0, %c0_0] : memref<12x108xbf16, #tpu.memory_space<vmem>>, vector<12x108xbf16>
    %1 = arith.extf %0 : vector<12x108xbf16> to vector<12x108xf32>
    %c0_1 = arith.constant 0 : index
    %c0_2 = arith.constant 0 : index
    %2 = vector.load %arg2[%c0_1, %c0_2] : memref<108x32xf32, #tpu.memory_space<vmem>>, vector<108x32xf32>
    %cst = arith.constant dense<0.000000e+00> : vector<12x32xf32>
    %3 = tpu.matmul %1, %2, %cst {dimension_numbers = #tpu.dot_dimension_numbers<[1], [0], [0], [1], [0, 0, 1, 1], [], []>} : vector<12x108xf32>, vector<108x32xf32>, vector<12x32xf32> -> vector<12x32xf32>
    %c0_3 = arith.constant 0 : index
    %c0_4 = arith.constant 0 : index
    %4 = vector.load %arg3[%c0_3, %c0_4] : memref<12x1xf32, #tpu.memory_space<vmem>>, vector<12x1xf32>
    %5 = vector.broadcast %4 : vector<12x1xf32> to vector<12x32xf32>
    %6 = arith.addf %3, %5 : vector<12x32xf32>
    %cst_5 = arith.constant 0.000000e+00 : f32
    %7 = vector.broadcast %cst_5 : f32 to vector<12x32xf32>
    %8 = arith.maximumf %6, %7 : vector<12x32xf32>
    %c0_6 = arith.constant 0 : index
    %c0_7 = arith.constant 0 : index
    %9 = vector.load %arg4[%c0_6, %c0_7] : memref<12x32xf32, #tpu.memory_space<vmem>>, vector<12x32xf32>
    tpu.vector_store %arg4[%c0_6, %c0_7], %8 {strides = array<i32>} : memref<12x32xf32, #tpu.memory_space<vmem>>, vector<12x32xf32>,
    return
  }
  func.func @transform_0(%arg0: i32) -> (i32, i32) {
    %c0_i32 = arith.constant 0 : i32
    %c0_i32_0 = arith.constant 0 : i32
    %c0_i32_1 = arith.constant 0 : i32
    return %c0_i32, %c0_i32_0 : i32, i32
  }
  func.func @transform_1(%arg0: i32) -> (i32, i32) {
    %c0_i32 = arith.constant 0 : i32
    %c0_i32_0 = arith.constant 0 : i32
    return %c0_i32, %arg0 : i32, i32
  }
  func.func @transform_2(%arg0: i32) -> (i32, i32) {
    %c0_i32 = arith.constant 0 : i32
    %c0_i32_0 = arith.constant 0 : i32
    %c0_i32_1 = arith.constant 0 : i32
    return %c0_i32, %c0_i32_0 : i32, i32
  }
  func.func @transform_3(%arg0: i32) -> (i32, i32) {
    %c0_i32 = arith.constant 0 : i32
    %c0_i32_0 = arith.constant 0 : i32
    return %c0_i32, %arg0 : i32, i32
  }
}

module attributes {stable_mosaic.version = 11 : i64} {
  func.func @_matmul_bias_act_kernel(%arg0: i32, %arg1: memref<12x216xbf16, #tpu.memory_space<vmem>>, %arg2: memref<216x32xf32, #tpu.memory_space<vmem>>, %arg3: memref<12x1xf32, #tpu.memory_space<vmem>>, %arg4: memref<12x32xf32, #tpu.memory_space<vmem>>) attributes {dimension_semantics = [#tpu.dimension_semantics<parallel>], iteration_bounds = array<i64: 1>, scalar_prefetch = 0 : i64, scratch_operands = 0 : i64, tpu.core_type = #tpu.core_type<tc>, window_params = [{pipeline_mode = #tpu.pipeline_mode<synchronous>, transform_indices = @transform_0, window_bounds = array<i64: 12, 216>}, {transform_indices = @transform_1, window_bounds = array<i64: 216, 32>}, {pipeline_mode = #tpu.pipeline_mode<synchronous>, transform_indices = @transform_2, window_bounds = array<i64: 12, 1>}, {transform_indices = @transform_3, window_bounds = array<i64: 12, 32>}]} {
    %c0 = arith.constant 0 : index
    %c0_0 = arith.constant 0 : index
    %0 = vector.load %arg1[%c0, %c0_0] : memref<12x216xbf16, #tpu.memory_space<vmem>>, vector<12x216xbf16>
    %1 = arith.extf %0 : vector<12x216xbf16> to vector<12x216xf32>
    %c0_1 = arith.constant 0 : index
    %c0_2 = arith.constant 0 : index
    %2 = vector.load %arg2[%c0_1, %c0_2] : memref<216x32xf32, #tpu.memory_space<vmem>>, vector<216x32xf32>
    %cst = arith.constant dense<0.000000e+00> : vector<12x32xf32>
    %3 = tpu.matmul %1, %2, %cst {dimension_numbers = #tpu.dot_dimension_numbers<[1], [0], [0], [1], [0, 0, 1, 1], [], []>} : vector<12x216xf32>, vector<216x32xf32>, vector<12x32xf32> -> vector<12x32xf32>
    %c0_3 = arith.constant 0 : index
    %c0_4 = arith.constant 0 : index
    %4 = vector.load %arg3[%c0_3, %c0_4] : memref<12x1xf32, #tpu.memory_space<vmem>>, vector<12x1xf32>
    %5 = vector.broadcast %4 : vector<12x1xf32> to vector<12x32xf32>
    %6 = arith.addf %3, %5 : vector<12x32xf32>
    %cst_5 = arith.constant 0.000000e+00 : f32
    %7 = vector.broadcast %cst_5 : f32 to vector<12x32xf32>
    %8 = arith.maximumf %6, %7 : vector<12x32xf32>
    %c0_6 = arith.constant 0 : index
    %c0_7 = arith.constant 0 : index
    %9 = vector.load %arg4[%c0_6, %c0_7] : memref<12x32xf32, #tpu.memory_space<vmem>>, vector<12x32xf32>
    tpu.vector_store %arg4[%c0_6, %c0_7], %8 {strides = array<i32>} : memref<12x32xf32, #tpu.memory_space<vmem>>, vector<12x32xf32>,
    return
  }
  func.func @transform_0(%arg0: i32) -> (i32, i32) {
    %c0_i32 = arith.constant 0 : i32
    %c0_i32_0 = arith.constant 0 : i32
    %c0_i32_1 = arith.constant 0 : i32
    return %c0_i32, %c0_i32_0 : i32, i32
  }
  func.func @transform_1(%arg0: i32) -> (i32, i32) {
    %c0_i32 = arith.constant 0 : i32
    %c0_i32_0 = arith.constant 0 : i32
    return %c0_i32, %arg0 : i32, i32
  }
  func.func @transform_2(%arg0: i32) -> (i32, i32) {
    %c0_i32 = arith.constant 0 : i32
    %c0_i32_0 = arith.constant 0 : i32
    %c0_i32_1 = arith.constant 0 : i32
    return %c0_i32, %c0_i32_0 : i32, i32
  }
  func.func @transform_3(%arg0: i32) -> (i32, i32) {
    %c0_i32 = arith.constant 0 : i32
    %c0_i32_0 = arith.constant 0 : i32
    return %c0_i32, %arg0 : i32, i32
  }
}

module attributes {stable_mosaic.version = 11 : i64} {
  func.func @_matmul_bias_act_kernel(%arg0: i32, %arg1: memref<48x12xbf16, #tpu.memory_space<vmem>>, %arg2: memref<12x32xf32, #tpu.memory_space<vmem>>, %arg3: memref<48x1xf32, #tpu.memory_space<vmem>>, %arg4: memref<48x32xf32, #tpu.memory_space<vmem>>) attributes {dimension_semantics = [#tpu.dimension_semantics<parallel>], iteration_bounds = array<i64: 1>, scalar_prefetch = 0 : i64, scratch_operands = 0 : i64, tpu.core_type = #tpu.core_type<tc>, window_params = [{pipeline_mode = #tpu.pipeline_mode<synchronous>, transform_indices = @transform_0, window_bounds = array<i64: 48, 12>}, {transform_indices = @transform_1, window_bounds = array<i64: 12, 32>}, {pipeline_mode = #tpu.pipeline_mode<synchronous>, transform_indices = @transform_2, window_bounds = array<i64: 48, 1>}, {transform_indices = @transform_3, window_bounds = array<i64: 48, 32>}]} {
    %c0 = arith.constant 0 : index
    %c0_0 = arith.constant 0 : index
    %0 = vector.load %arg1[%c0, %c0_0] : memref<48x12xbf16, #tpu.memory_space<vmem>>, vector<48x12xbf16>
    %1 = arith.extf %0 : vector<48x12xbf16> to vector<48x12xf32>
    %c0_1 = arith.constant 0 : index
    %c0_2 = arith.constant 0 : index
    %2 = vector.load %arg2[%c0_1, %c0_2] : memref<12x32xf32, #tpu.memory_space<vmem>>, vector<12x32xf32>
    %cst = arith.constant dense<0.000000e+00> : vector<48x32xf32>
    %3 = tpu.matmul %1, %2, %cst {dimension_numbers = #tpu.dot_dimension_numbers<[1], [0], [0], [1], [0, 0, 1, 1], [], []>} : vector<48x12xf32>, vector<12x32xf32>, vector<48x32xf32> -> vector<48x32xf32>
    %c0_3 = arith.constant 0 : index
    %c0_4 = arith.constant 0 : index
    %4 = vector.load %arg3[%c0_3, %c0_4] : memref<48x1xf32, #tpu.memory_space<vmem>>, vector<48x1xf32>
    %5 = vector.broadcast %4 : vector<48x1xf32> to vector<48x32xf32>
    %6 = arith.addf %3, %5 : vector<48x32xf32>
    %c0_5 = arith.constant 0 : index
    %c0_6 = arith.constant 0 : index
    %7 = vector.load %arg4[%c0_5, %c0_6] : memref<48x32xf32, #tpu.memory_space<vmem>>, vector<48x32xf32>
    tpu.vector_store %arg4[%c0_5, %c0_6], %6 {strides = array<i32>} : memref<48x32xf32, #tpu.memory_space<vmem>>, vector<48x32xf32>,
    return
  }
  func.func @transform_0(%arg0: i32) -> (i32, i32) {
    %c0_i32 = arith.constant 0 : i32
    %c0_i32_0 = arith.constant 0 : i32
    %c0_i32_1 = arith.constant 0 : i32
    return %c0_i32, %c0_i32_0 : i32, i32
  }
  func.func @transform_1(%arg0: i32) -> (i32, i32) {
    %c0_i32 = arith.constant 0 : i32
    %c0_i32_0 = arith.constant 0 : i32
    return %c0_i32, %arg0 : i32, i32
  }
  func.func @transform_2(%arg0: i32) -> (i32, i32) {
    %c0_i32 = arith.constant 0 : i32
    %c0_i32_0 = arith.constant 0 : i32
    %c0_i32_1 = arith.constant 0 : i32
    return %c0_i32, %c0_i32_0 : i32, i32
  }
  func.func @transform_3(%arg0: i32) -> (i32, i32) {
    %c0_i32 = arith.constant 0 : i32
    %c0_i32_0 = arith.constant 0 : i32
    return %c0_i32, %arg0 : i32, i32
  }
}

module attributes {stable_mosaic.version = 11 : i64} {
  func.func @_matmul_bias_act_kernel(%arg0: i32, %arg1: memref<12x216xbf16, #tpu.memory_space<vmem>>, %arg2: memref<216x128xf32, #tpu.memory_space<vmem>>, %arg3: memref<12x1xf32, #tpu.memory_space<vmem>>, %arg4: memref<12x128xf32, #tpu.memory_space<vmem>>) attributes {dimension_semantics = [#tpu.dimension_semantics<parallel>], iteration_bounds = array<i64: 1>, scalar_prefetch = 0 : i64, scratch_operands = 0 : i64, tpu.core_type = #tpu.core_type<tc>, window_params = [{pipeline_mode = #tpu.pipeline_mode<synchronous>, transform_indices = @transform_0, window_bounds = array<i64: 12, 216>}, {transform_indices = @transform_1, window_bounds = array<i64: 216, 128>}, {pipeline_mode = #tpu.pipeline_mode<synchronous>, transform_indices = @transform_2, window_bounds = array<i64: 12, 1>}, {transform_indices = @transform_3, window_bounds = array<i64: 12, 128>}]} {
    %c0 = arith.constant 0 : index
    %c0_0 = arith.constant 0 : index
    %0 = vector.load %arg1[%c0, %c0_0] : memref<12x216xbf16, #tpu.memory_space<vmem>>, vector<12x216xbf16>
    %1 = arith.extf %0 : vector<12x216xbf16> to vector<12x216xf32>
    %c0_1 = arith.constant 0 : index
    %c0_2 = arith.constant 0 : index
    %2 = vector.load %arg2[%c0_1, %c0_2] : memref<216x128xf32, #tpu.memory_space<vmem>>, vector<216x128xf32>
    %cst = arith.constant dense<0.000000e+00> : vector<12x128xf32>
    %3 = tpu.matmul %1, %2, %cst {dimension_numbers = #tpu.dot_dimension_numbers<[1], [0], [0], [1], [0, 0, 1, 1], [], []>} : vector<12x216xf32>, vector<216x128xf32>, vector<12x128xf32> -> vector<12x128xf32>
    %c0_3 = arith.constant 0 : index
    %c0_4 = arith.constant 0 : index
    %4 = vector.load %arg3[%c0_3, %c0_4] : memref<12x1xf32, #tpu.memory_space<vmem>>, vector<12x1xf32>
    %5 = vector.broadcast %4 : vector<12x1xf32> to vector<12x128xf32>
    %6 = arith.addf %3, %5 : vector<12x128xf32>
    %cst_5 = arith.constant 0.000000e+00 : f32
    %7 = vector.broadcast %cst_5 : f32 to vector<12x128xf32>
    %8 = arith.maximumf %6, %7 : vector<12x128xf32>
    %c0_6 = arith.constant 0 : index
    %c0_7 = arith.constant 0 : index
    %9 = vector.load %arg4[%c0_6, %c0_7] : memref<12x128xf32, #tpu.memory_space<vmem>>, vector<12x128xf32>
    tpu.vector_store %arg4[%c0_6, %c0_7], %8 {strides = array<i32>} : memref<12x128xf32, #tpu.memory_space<vmem>>, vector<12x128xf32>,
    return
  }
  func.func @transform_0(%arg0: i32) -> (i32, i32) {
    %c0_i32 = arith.constant 0 : i32
    %c0_i32_0 = arith.constant 0 : i32
    %c0_i32_1 = arith.constant 0 : i32
    return %c0_i32, %c0_i32_0 : i32, i32
  }
  func.func @transform_1(%arg0: i32) -> (i32, i32) {
    %c0_i32 = arith.constant 0 : i32
    %c0_i32_0 = arith.constant 0 : i32
    return %c0_i32, %arg0 : i32, i32
  }
  func.func @transform_2(%arg0: i32) -> (i32, i32) {
    %c0_i32 = arith.constant 0 : i32
    %c0_i32_0 = arith.constant 0 : i32
    %c0_i32_1 = arith.constant 0 : i32
    return %c0_i32, %c0_i32_0 : i32, i32
  }
  func.func @transform_3(%arg0: i32) -> (i32, i32) {
    %c0_i32 = arith.constant 0 : i32
    %c0_i32_0 = arith.constant 0 : i32
    return %c0_i32, %arg0 : i32, i32
  }
}

module attributes {stable_mosaic.version = 11 : i64} {
  func.func @_matmul_bias_act_kernel(%arg0: i32, %arg1: memref<48x12xbf16, #tpu.memory_space<vmem>>, %arg2: memref<12x128xf32, #tpu.memory_space<vmem>>, %arg3: memref<48x1xf32, #tpu.memory_space<vmem>>, %arg4: memref<48x128xf32, #tpu.memory_space<vmem>>) attributes {dimension_semantics = [#tpu.dimension_semantics<parallel>], iteration_bounds = array<i64: 1>, scalar_prefetch = 0 : i64, scratch_operands = 0 : i64, tpu.core_type = #tpu.core_type<tc>, window_params = [{pipeline_mode = #tpu.pipeline_mode<synchronous>, transform_indices = @transform_0, window_bounds = array<i64: 48, 12>}, {transform_indices = @transform_1, window_bounds = array<i64: 12, 128>}, {pipeline_mode = #tpu.pipeline_mode<synchronous>, transform_indices = @transform_2, window_bounds = array<i64: 48, 1>}, {transform_indices = @transform_3, window_bounds = array<i64: 48, 128>}]} {
    %c0 = arith.constant 0 : index
    %c0_0 = arith.constant 0 : index
    %0 = vector.load %arg1[%c0, %c0_0] : memref<48x12xbf16, #tpu.memory_space<vmem>>, vector<48x12xbf16>
    %1 = arith.extf %0 : vector<48x12xbf16> to vector<48x12xf32>
    %c0_1 = arith.constant 0 : index
    %c0_2 = arith.constant 0 : index
    %2 = vector.load %arg2[%c0_1, %c0_2] : memref<12x128xf32, #tpu.memory_space<vmem>>, vector<12x128xf32>
    %cst = arith.constant dense<0.000000e+00> : vector<48x128xf32>
    %3 = tpu.matmul %1, %2, %cst {dimension_numbers = #tpu.dot_dimension_numbers<[1], [0], [0], [1], [0, 0, 1, 1], [], []>} : vector<48x12xf32>, vector<12x128xf32>, vector<48x128xf32> -> vector<48x128xf32>
    %c0_3 = arith.constant 0 : index
    %c0_4 = arith.constant 0 : index
    %4 = vector.load %arg3[%c0_3, %c0_4] : memref<48x1xf32, #tpu.memory_space<vmem>>, vector<48x1xf32>
    %5 = vector.broadcast %4 : vector<48x1xf32> to vector<48x128xf32>
    %6 = arith.addf %3, %5 : vector<48x128xf32>
    %c0_5 = arith.constant 0 : index
    %c0_6 = arith.constant 0 : index
    %7 = vector.load %arg4[%c0_5, %c0_6] : memref<48x128xf32, #tpu.memory_space<vmem>>, vector<48x128xf32>
    tpu.vector_store %arg4[%c0_5, %c0_6], %6 {strides = array<i32>} : memref<48x128xf32, #tpu.memory_space<vmem>>, vector<48x128xf32>,
    return
  }
  func.func @transform_0(%arg0: i32) -> (i32, i32) {
    %c0_i32 = arith.constant 0 : i32
    %c0_i32_0 = arith.constant 0 : i32
    %c0_i32_1 = arith.constant 0 : i32
    return %c0_i32, %c0_i32_0 : i32, i32
  }
  func.func @transform_1(%arg0: i32) -> (i32, i32) {
    %c0_i32 = arith.constant 0 : i32
    %c0_i32_0 = arith.constant 0 : i32
    return %c0_i32, %arg0 : i32, i32
  }
  func.func @transform_2(%arg0: i32) -> (i32, i32) {
    %c0_i32 = arith.constant 0 : i32
    %c0_i32_0 = arith.constant 0 : i32
    %c0_i32_1 = arith.constant 0 : i32
    return %c0_i32, %c0_i32_0 : i32, i32
  }
  func.func @transform_3(%arg0: i32) -> (i32, i32) {
    %c0_i32 = arith.constant 0 : i32
    %c0_i32_0 = arith.constant 0 : i32
    return %c0_i32, %arg0 : i32, i32
  }
}

module attributes {stable_mosaic.version = 11 : i64} {
  func.func @_matmul_bias_act_res_kernel(%arg0: i32, %arg1: memref<3x216xbf16, #tpu.memory_space<vmem>>, %arg2: memref<216x256xf32, #tpu.memory_space<vmem>>, %arg3: memref<3x1xf32, #tpu.memory_space<vmem>>, %arg4: memref<3x256xf32, #tpu.memory_space<vmem>>, %arg5: memref<3x256xf32, #tpu.memory_space<vmem>>) attributes {dimension_semantics = [#tpu.dimension_semantics<parallel>], iteration_bounds = array<i64: 2>, scalar_prefetch = 0 : i64, scratch_operands = 0 : i64, tpu.core_type = #tpu.core_type<tc>, window_params = [{pipeline_mode = #tpu.pipeline_mode<synchronous>, transform_indices = @transform_0, window_bounds = array<i64: 3, 216>}, {transform_indices = @transform_1, window_bounds = array<i64: 216, 256>}, {pipeline_mode = #tpu.pipeline_mode<synchronous>, transform_indices = @transform_2, window_bounds = array<i64: 3, 1>}, {transform_indices = @transform_3, window_bounds = array<i64: 3, 256>}, {transform_indices = @transform_4, window_bounds = array<i64: 3, 256>}]} {
    %c0 = arith.constant 0 : index
    %c0_0 = arith.constant 0 : index
    %0 = vector.load %arg1[%c0, %c0_0] : memref<3x216xbf16, #tpu.memory_space<vmem>>, vector<3x216xbf16>
    %1 = arith.extf %0 : vector<3x216xbf16> to vector<3x216xf32>
    %c0_1 = arith.constant 0 : index
    %c0_2 = arith.constant 0 : index
    %2 = vector.load %arg2[%c0_1, %c0_2] : memref<216x256xf32, #tpu.memory_space<vmem>>, vector<216x256xf32>
    %cst = arith.constant dense<0.000000e+00> : vector<3x256xf32>
    %3 = tpu.matmul %1, %2, %cst {dimension_numbers = #tpu.dot_dimension_numbers<[1], [0], [0], [1], [0, 0, 1, 1], [], []>} : vector<3x216xf32>, vector<216x256xf32>, vector<3x256xf32> -> vector<3x256xf32>
    %c0_3 = arith.constant 0 : index
    %c0_4 = arith.constant 0 : index
    %4 = vector.load %arg3[%c0_3, %c0_4] : memref<3x1xf32, #tpu.memory_space<vmem>>, vector<3x1xf32>
    %5 = vector.broadcast %4 : vector<3x1xf32> to vector<3x256xf32>
    %6 = arith.addf %3, %5 : vector<3x256xf32>
    %cst_5 = arith.constant 0.000000e+00 : f32
    %7 = vector.broadcast %cst_5 : f32 to vector<3x256xf32>
    %8 = arith.maximumf %6, %7 : vector<3x256xf32>
    %c0_6 = arith.constant 0 : index
    %c0_7 = arith.constant 0 : index
    %9 = vector.load %arg4[%c0_6, %c0_7] : memref<3x256xf32, #tpu.memory_space<vmem>>, vector<3x256xf32>
    %10 = arith.addf %8, %9 : vector<3x256xf32>
    %c0_8 = arith.constant 0 : index
    %c0_9 = arith.constant 0 : index
    %11 = vector.load %arg5[%c0_8, %c0_9] : memref<3x256xf32, #tpu.memory_space<vmem>>, vector<3x256xf32>
    tpu.vector_store %arg5[%c0_8, %c0_9], %10 {strides = array<i32>} : memref<3x256xf32, #tpu.memory_space<vmem>>, vector<3x256xf32>,
    return
  }
  func.func @transform_0(%arg0: i32) -> (i32, i32) {
    %c0_i32 = arith.constant 0 : i32
    %c0_i32_0 = arith.constant 0 : i32
    %c0_i32_1 = arith.constant 0 : i32
    return %c0_i32, %c0_i32_0 : i32, i32
  }
  func.func @transform_1(%arg0: i32) -> (i32, i32) {
    %c0_i32 = arith.constant 0 : i32
    %c0_i32_0 = arith.constant 0 : i32
    return %c0_i32, %arg0 : i32, i32
  }
  func.func @transform_2(%arg0: i32) -> (i32, i32) {
    %c0_i32 = arith.constant 0 : i32
    %c0_i32_0 = arith.constant 0 : i32
    %c0_i32_1 = arith.constant 0 : i32
    return %c0_i32, %c0_i32_0 : i32, i32
  }
  func.func @transform_3(%arg0: i32) -> (i32, i32) {
    %c0_i32 = arith.constant 0 : i32
    %c0_i32_0 = arith.constant 0 : i32
    return %c0_i32, %arg0 : i32, i32
  }
  func.func @transform_4(%arg0: i32) -> (i32, i32) {
    %c0_i32 = arith.constant 0 : i32
    %c0_i32_0 = arith.constant 0 : i32
    return %c0_i32, %arg0 : i32, i32
  }
}

</mosaic_0001>

<llo_original>
// kernel: rsu4_forward.11
$region0: #{rsu4_forward.11}
  #allocation0 [shape = 'u32[]', space=smem, size = 0x4, offset = 0x4, fixed_abs, tag = 'smem constant byte address 0x4 - core index']
  #allocation1 [shape = 'u32[144,128]{1,0:T(1,128)}', space=vmem, size = 0x12000, scoped, tag = 'internal scratch']
  %s0 = inlined_call_operand.vmem [shape: bf16[12,27], index: 0, kind: input, shape index: {}]
  %s1 = inlined_call_operand.vmem [shape: f32[27,512], index: 1, kind: input, shape index: {}]
  %s2 = inlined_call_operand.vmem [shape: f32[12,1], index: 2, kind: input, shape index: {}]
  %s3 = inlined_call_operand.vmem [shape: f32[12,512], index: 3, kind: output, shape index: {}]
  %s4 = sld [smem:[#allocation0]]
  $region87: #{rsu4_forward.11} parent=0
    _
  %s6 = ssub.s32 1, %s4
  %s7 = scalar_select 0, %s6, %s4
  $region1: #{rsu4_forward.11} parent=0
    #allocation2 [shape = 'u8[65536]{0}', space=vmem, size = 0x10000, scoped, tag = 'input window, operand 1']
    #allocation3 [shape = 'u8[32768]{0}', space=vmem, size = 0x8000, scoped, tag = 'output window, operand 0']
    loop: start=0, step=1, limit=4
    $region2: #{rsu4_forward.11} parent=1 // loop_pre_header
      _
    $region3: #{rsu4_forward.11} parent=1 // loop_header
      %s9 = sphi 0, %s13
      %p10 = scmp.ge.s32.totalorder %s9, 4
      %s17 = sphi 0, %s17
      %s19 = sphi 0, %s17
      %s20 = sphi 0, %s19
      %s34 = sphi 0, %s20
      %s40 = sphi 0, %s42
      %s43 = sphi 0, %s40
      %s44 = sphi 0, %s43
      %s60 = sphi 0, %s44
      %s64 = sphi 0, %s64
      %s66 = sphi 0, %s64
      %s67 = sphi 0, %s66
      %s81 = sphi 0, %s67
      %s87 = sphi 0, %s89
      %s90 = sphi 0, %s87
      %s91 = sphi 0, %s90
      %s107 = sphi 0, %s91
    $region4: #{rsu4_forward.11} parent=1 // loop_header_branch
      %12 = sbr.rel (%p10) target = $region8
    $region5: #{rsu4_forward.11} parent=1 // loop_body
      %s14 = ssub.s32 %s9, 1
      %s15 = ssub.s32 %s9, 2
      %s16 = sadd.s32 %s9, 1
      %s18 = sadd.s32 %s17, 1
      %p21 = scmp.eq.s32.totalorder %s9, 1
      %p22 = scmp.ne.s32.totalorder %s17, %s19
      %p23 = scmp.eq.s32.totalorder %s9, 0
      %p24 = por %p22, %p23
      %p25 = scmp.ne.s32.totalorder %s17, %s19
      %p26 = scmp.eq.s32.totalorder %s14, 1
      %p27 = por %p25, %p26
      %p28 = scmp.ne.s32.totalorder %s19, %s20
      %p29 = scmp.eq.s32.totalorder %s14, 0
      %p30 = por %p28, %p29
      %p31 = scmp.ne.s32.totalorder %s19, %s20
      %p32 = scmp.eq.s32.totalorder %s15, 1
      %p33 = por %p31, %p32
      %p35 = scmp.ne.s32.totalorder %s20, %s34
      %p36 = scmp.eq.s32.totalorder %s15, 0
      %p37 = por %p35, %p36
      %s38 = ssub.s32 %s9, %s16
      %p39 = scmp.eq.s32.totalorder %s38, 0
      %s41 = sadd.s32 %s40, 1
      %s42 = scalar_select %p39, %s40, %s41
      %p45 = pneg %p39
      %p46 = scmp.eq.s32.totalorder %s9, 1
      %p47 = por %p45, %p46
      %p48 = scmp.ne.s32.totalorder %s40, %s43
      %p49 = scmp.eq.s32.totalorder %s9, 0
      %p50 = por %p48, %p49
      %p51 = scmp.ne.s32.totalorder %s40, %s43
      %p52 = scmp.eq.s32.totalorder %s14, 1
      %p53 = por %p51, %p52
      %p54 = scmp.ne.s32.totalorder %s43, %s44
      %p55 = scmp.eq.s32.totalorder %s14, 0
      %p56 = por %p54, %p55
      %p57 = scmp.ne.s32.totalorder %s43, %s44
      %p58 = scmp.eq.s32.totalorder %s15, 1
      %p59 = por %p57, %p58
      %p61 = scmp.ne.s32.totalorder %s44, %s60
      %p62 = scmp.eq.s32.totalorder %s15, 0
      %p63 = por %p61, %p62
      %s65 = sadd.s32 %s64, 1
      %p68 = scmp.eq.s32.totalorder %s9, 1
      %p69 = scmp.ne.s32.totalorder %s64, %s66
      %p70 = scmp.eq.s32.totalorder %s9, 0
      %p71 = por %p69, %p70
      %p72 = scmp.ne.s32.totalorder %s64, %s66
      %p73 = scmp.eq.s32.totalorder %s14, 1
      %p74 = por %p72, %p73
      %p75 = scmp.ne.s32.totalorder %s66, %s67
      %p76 = scmp.eq.s32.totalorder %s14, 0
      %p77 = por %p75, %p76
      %p78 = scmp.ne.s32.totalorder %s66, %s67
      %p79 = scmp.eq.s32.totalorder %s15, 1
      %p80 = por %p78, %p79
      %p82 = scmp.ne.s32.totalorder %s67, %s81
      %p83 = scmp.eq.s32.totalorder %s15, 0
      %p84 = por %p82, %p83
      %s85 = ssub.s32 %s9, %s16
      %p86 = scmp.eq.s32.totalorder %s85, 0
      %s88 = sadd.s32 %s87, 1
      %s89 = scalar_select %p86, %s87, %s88
      %p92 = pneg %p86
      %p93 = scmp.eq.s32.totalorder %s9, 1
      %p94 = por %p92, %p93
      %p95 = scmp.ne.s32.totalorder %s87, %s90
      %p96 = scmp.eq.s32.totalorder %s9, 0
      %p97 = por %p95, %p96
      %p98 = scmp.ne.s32.totalorder %s87, %s90
      %p99 = scmp.eq.s32.totalorder %s14, 1
      %p100 = por %p98, %p99
      %p101 = scmp.ne.s32.totalorder %s90, %s91
      %p102 = scmp.eq.s32.totalorder %s14, 0
      %p103 = por %p101, %p102
      %p104 = scmp.ne.s32.totalorder %s90, %s91
      %p105 = scmp.eq.s32.totalorder %s15, 1
      %p106 = por %p104, %p105
      %p108 = scmp.ne.s32.totalorder %s91, %s107
      %p109 = scmp.eq.s32.totalorder %s15, 0
      %p110 = por %p108, %p109
      %p111 = scmp.le.s32.totalorder 1, %s9
      %p112 = scmp.lt.s32.totalorder %s9, 3
      %p113 = pnand %p111, %p112
      %p114 = pneg %p113
      // Predicated region
      $region9: #{rsu4_forward.11} parent=5 // pred_check
        _
      $region10: #{rsu4_forward.11} parent=5 // pred_check_branch
        %116 = sbr.rel (%p113) target = $region12
      $region11: #{rsu4_forward.11} parent=5 // pred_region
        %s117 = ssub.s32 %s9, 1
        // Predicated region
        $region13: #{rsu4_forward.11} parent=11 // pred_check
          %p118 = pneg %p30
        $region14: #{rsu4_forward.11} parent=11 // pred_check_branch
          %120 = sbr.rel (%p118) target = $region16
        $region15: #{rsu4_forward.11} parent=11 // pred_region
          _
        $region16: #{rsu4_forward.11} parent=11 // pred_fallthru
          _
        // Predicated region
        $region17: #{rsu4_forward.11} parent=11 // pred_check
          %p121 = pneg %p77
        $region18: #{rsu4_forward.11} parent=11 // pred_check_branch
          %123 = sbr.rel (%p121) target = $region20
        $region19: #{rsu4_forward.11} parent=11 // pred_region
          _
        $region20: #{rsu4_forward.11} parent=11 // pred_fallthru
          _
      $region12: #{rsu4_forward.11} parent=5 // pred_fallthru
        _
      %p124 = scmp.lt.s32.totalorder %s9, 2
      // Predicated region
      $region21: #{rsu4_forward.11} parent=5 // pred_check
        %p125 = pneg %p124
      $region22: #{rsu4_forward.11} parent=5 // pred_check_branch
        %127 = sbr.rel (%p125) target = $region24
      $region23: #{rsu4_forward.11} parent=5 // pred_region
        // Predicated region
        $region25: #{rsu4_forward.11} parent=23 // pred_check
          %p128 = pneg %p50
        $region26: #{rsu4_forward.11} parent=23 // pred_check_branch
          %130 = sbr.rel (%p128) target = $region28
        $region27: #{rsu4_forward.11} parent=23 // pred_region
          %s131 = sand.u32 %s40, 1
          %s132 = sand.u32 %s40, 1
          %s133 = smul.addr %s132, 64
          %s134 = scalar_lea.vmem [#allocation2], %s133
          %s135 = smul.u32 2, %s9
          %s136 = smul.addr %s135, 8
          %s137 = scalar_lea.vmem %s1, %s136
          // Predicated region
          $region29: #{rsu4_forward.11} parent=27 // pred_check
            _
          $region30: #{rsu4_forward.11} parent=27 // pred_check_branch
            %139 = sbr.rel (0) target = $region32
          $region31: #{rsu4_forward.11} parent=27 // pred_region
            // Predicated region
            $region33: #{rsu4_forward.11} parent=31 // pred_check
              _
            $region34: #{rsu4_forward.11} parent=31 // pred_check_branch
              %141 = sbr.rel (0) target = $region36
            $region35: #{rsu4_forward.11} parent=31 // pred_region
              loop: start=0, step=1, limit=1
              $region37: #{rsu4_forward.11} parent=35 // loop_pre_header
                _
              $region38: #{rsu4_forward.11} parent=35 // loop_header
                %s143 = sphi 0, %s147
                %p144 = scmp.ge.s32.totalorder %s143, 1
                %s148 = sphi %s137, %s137
                %s149 = sphi %s134, %s134
              $region39: #{rsu4_forward.11} parent=35 // loop_header_branch
                %146 = sbr.rel (%p144) target = $region43
              $region40: #{rsu4_forward.11} parent=35 // loop_body
                %v150 = vld [vmem:[%s148] sm:$0xff]
                %151 = vst [vmem:[%s149] sm:$0xff] %v150
                %v152 = vld [vmem:[%s148 + $0x8] sm:$0xff]
                %153 = vst [vmem:[%s149 + $0x8] sm:$0xff] %v152
                %v154 = vld [vmem:[%s148 + $0x20] sm:$0xff]
                %155 = vst [vmem:[%s149 + $0x10] sm:$0xff] %v154
                %v156 = vld [vmem:[%s148 + $0x28] sm:$0xff]
                %157 = vst [vmem:[%s149 + $0x18] sm:$0xff] %v156
                %v158 = vld [vmem:[%s148 + $0x40] sm:$0xff]
                %159 = vst [vmem:[%s149 + $0x20] sm:$0xff] %v158
                %v160 = vld [vmem:[%s148 + $0x48] sm:$0xff]
                %161 = vst [vmem:[%s149 + $0x28] sm:$0xff] %v160
                %v162 = vld [vmem:[%s148 + $0x60] sm:$0xff]
                %163 = vst [vmem:[%s149 + $0x30] sm:$0xff] %v162
                %v164 = vld [vmem:[%s148 + $0x68] sm:$0xff]
                %165 = vst [vmem:[%s149 + $0x38] sm:$0xff] %v164
              $region41: #{rsu4_forward.11} parent=35 // loop_footer
                %s147 = sadd.s32 1, %s143
              $region42: #{rsu4_forward.11} parent=35 // loop_footer_branch
                %142 = sbr.rel target = $region38
              $region43: #{rsu4_forward.11} parent=35 // loop_exit
                _
            $region36: #{rsu4_forward.11} parent=31 // pred_fallthru
              _
            // Predicated region
            $region44: #{rsu4_forward.11} parent=31 // pred_check
              _
            $region45: #{rsu4_forward.11} parent=31 // pred_check_branch
              %167 = sbr.rel target = $region47
            $region46: #{rsu4_forward.11} parent=31 // pred_region
              _
            $region47: #{rsu4_forward.11} parent=31 // pred_fallthru
              _
          $region32: #{rsu4_forward.11} parent=27 // pred_fallthru
            _
          %168 = vnop
        $region28: #{rsu4_forward.11} parent=23 // pred_fallthru
          _
      $region24: #{rsu4_forward.11} parent=5 // pred_fallthru
        _
      %p169 = scmp.le.s32.totalorder 1, %s9
      %p170 = scmp.lt.s32.totalorder %s9, 3
      %p171 = pnand %p169, %p170
      %p172 = pneg %p171
      // Predicated region
      $region48: #{rsu4_forward.11} parent=5 // pred_check
        _
      $region49: #{rsu4_forward.11} parent=5 // pred_check_branch
        %174 = sbr.rel (%p171) target = $region51
      $region50: #{rsu4_forward.11} parent=5 // pred_region
        %s175 = ssub.s32 %s9, 1
        %s176 = sand.u32 %s43, 1
        %s177 = sand.u32 %s43, 1
        %s178 = smul.addr %s177, 64
        %s179 = scalar_lea.vmem [#allocation2], %s178
        // Predicated region
        $region52: #{rsu4_forward.11} parent=50 // pred_check
          %p180 = pneg %p56
        $region53: #{rsu4_forward.11} parent=50 // pred_check_branch
          %182 = sbr.rel (%p180) target = $region55
        $region54: #{rsu4_forward.11} parent=50 // pred_region
          _
        $region55: #{rsu4_forward.11} parent=50 // pred_fallthru
          _
        %p183 = pneg %p30
        %p184 = pneg %p27
        %s185 = sand.u32 %s43, 1
        %s186 = sand.u32 %s43, 1
        %s187 = smul.addr %s186, 64
        %s188 = scalar_lea.vmem [#allocation2], %s187
        %p189 = pneg %p56
        %p190 = pneg %p53
        %p191 = pneg %p77
        %p192 = pneg %p74
        %p193 = pneg %p103
        %p194 = pneg %p100
        %s195 = sand.u32 %s90, 1
        %s196 = sand.u32 %s90, 1
        %s197 = smul.addr %s196, 32
        %s198 = scalar_lea.vmem [#allocation3], %s197
        %s199 = smul.u32 2, %s14
        %s200 = smul.u32 2, %s14
        %v201 = vld [vmem:[%s0] sm:$0xf]
        %v202 = vld [vmem:[%s0 + $0x4] sm:$0x3]
        %v203 = vunpack.c.l.bf16 %v201
        %v204 = vunpack.c.l.bf16 %v202
        %v205 = vld [vmem:[%s179] sm:$0xff]
        %v206 = vld [vmem:[%s179 + $0x8] sm:$0xff]
        %v207 = vld [vmem:[%s179 + $0x10] sm:$0xff]
        %v208 = vld [vmem:[%s179 + $0x18] sm:$0xff]
        %v209 = vld [vmem:[%s179 + $0x20] sm:$0xff]
        %v210 = vld [vmem:[%s179 + $0x28] sm:$0xff]
        %v211 = vld [vmem:[%s179 + $0x30] sm:$0x7]
        %v212 = vld [vmem:[%s179 + $0x38] sm:$0x7]
        %v213 = vld [vmem:[%s2] sm:$0xff]
        %v214 = vld [vmem:[%s2 + $0x8] sm:$0xf]
        %216 = vset.pattern.permute.xlu0 0
        %217 = vperm.xlu0 %216, %v213
        %v218 = vpop.permute.xlu0 %217
        %221 = vset.pattern.permute.xlu0 0
        %222 = vperm.xlu0 %221, %v214
        %v223 = vpop.permute.xlu0 %222
        %vm225 = vcmask 220160
        %v227 = vsel %vm225, %v203, 0
        %v230 = vsel %vm225, %v204, 0
        %vm232 = vcmask 1042432
        %v234 = vsel %vm232, %v211, 0
        %v237 = vsel %vm232, %v212, 0
        %239 = vmatprep.subr.mxu0 %v206
        %240 = vmatpush1.msra.mxu0 %v205
        %241 = vmatprep.subr.mxu0 %v208
        %242 = vmatpush1.msra.mxu0 %v207
        %243 = vmatprep.subr.mxu0 %v210
        %244 = vmatpush1.msra.mxu0 %v209
        %245 = vmatprep.subr.mxu0 %v237
        %246 = vmatpush1.msra.mxu0 %v234
        %247 = vmatprep.subr.mxu0 0.0
        %248 = vmatpush1.msra.mxu0 0.0
        %249 = vmatprep.subr.mxu0 0.0
        %250 = vmatpush1.msra.mxu0 0.0
        %251 = vmatprep.subr.mxu0 0.0
        %252 = vmatpush1.msra.mxu0 0.0
        %253 = vmatprep.subr.mxu0 0.0
        %254 = vmatpush1.msra.mxu0 0.0
        %255 = vmatprep.subr.mxu0 0.0
        %256 = vmatpush1.msra.mxu0 0.0
        %257 = vmatprep.subr.mxu0 0.0
        %258 = vmatpush1.msra.mxu0 0.0
        %259 = vmatprep.subr.mxu0 0.0
        %260 = vmatpush1.msra.mxu0 0.0
        %261 = vmatprep.subr.mxu0 0.0
        %262 = vmatpush1.msra.mxu0 0.0
        %263 = vmatprep.subr.mxu0 0.0
        %264 = vmatpush1.msra.mxu0 0.0
        %265 = vmatprep.subr.mxu0 0.0
        %266 = vmatpush1.msra.mxu0 0.0
        %267 = vmatprep.subr.mxu0 0.0
        %268 = vmatpush1.msra.mxu0 0.0
        %269 = vmatprep.subr.mxu0 0.0
        %270 = vmatpush1.msra.mxu0 0.0
        %271 = vmatprep.subr.mxu0 0.0
        %272 = vmatpush1.msra.mxu0 0.0
        %273 = vmatprep.subr.mxu0 0.0
        %274 = vmatpush1.msra.mxu0 0.0
        %275 = vmatprep.subr.mxu0 0.0
        %276 = vmatpush1.msra.mxu0 0.0
        %277 = vmatprep.subr.mxu0 0.0
        %278 = vmatpush1.msra.mxu0 0.0
        %279 = vmatprep.subr.mxu0 0.0
        %280 = vmatpush1.msra.mxu0 0.0
        %281 = vmatprep.subr.mxu0 0.0
        %282 = vmatpush1.msra.mxu0 0.0
        %283 = vmatprep.subr.mxu0 0.0
        %284 = vmatpush1.msra.mxu0 0.0
        %285 = vmatprep.subr.mxu0 0.0
        %286 = vmatpush1.msra.mxu0 0.0
        %287 = vmatprep.subr.mxu0 0.0
        %288 = vmatpush1.msra.mxu0 0.0
        %289 = vmatprep.subr.mxu0 0.0
        %290 = vmatpush1.msra.mxu0 0.0
        %291 = vmatprep.subr.mxu0 0.0
        %292 = vmatpush1.msra.mxu0 0.0
        %293 = vmatprep.subr.mxu0 0.0
        %294 = vmatpush1.msra.mxu0 0.0
        %295 = vmatprep.subr.mxu0 0.0
        %296 = vmatpush1.msra.mxu0 0.0
        %297 = vmatprep.subr.mxu0 0.0
        %298 = vmatpush1.msra.mxu0 0.0
        %299 = vmatprep.subr.mxu0 0.0
        %300 = vmatpush1.msra.mxu0 0.0
        %301 = vmatprep.subr.mxu0 0.0
        %302 = vmatpush1.msra.mxu0 0.0
        %303 = vmatprep.mubr.f32.mxu0 0.0
        %304 = vmatmul.mubr.f32.gmra.mrb[0].mxu0 %v227
        %v305 = vpop.f32.mrb[0].mxu0
        %v306 = vadd.f32 %v218, %v305
        %v307 = vpop.f32.mrb[0].mxu0
        %v308 = vadd.f32 %v218, %v307
        %309 = vmatprep.mubr.f32.mxu0 0.0
        %310 = vmatmul.mubr.f32.gmra.mrb[0].mxu0 %v230
        %v311 = vpop.f32.mrb[0].mxu0
        %v312 = vadd.f32 %v223, %v311
        %v313 = vpop.f32.mrb[0].mxu0
        %v314 = vadd.f32 %v223, %v313
        %315 = vdwg.mxu0
        %v316 = vmax.f32 %v306, 0.0
        %v317 = vmax.f32 %v308, 0.0
        %v318 = vmax.f32 %v312, 0.0
        %v319 = vmax.f32 %v314, 0.0
        %320 = vst [vmem:[%s198] sm:$0xff] %v316
        %321 = vst [vmem:[%s198 + $0x8] sm:$0xff] %v317
        %322 = vst [vmem:[%s198 + $0x10] sm:$0xf] %v318
        %323 = vst [vmem:[%s198 + $0x18] sm:$0xf] %v319
        %s324 = sand.u32 %s90, 1
        %s325 = sand.u32 %s90, 1
        %s326 = smul.addr %s325, 32
        %s327 = scalar_lea.vmem [#allocation3], %s326
        // Predicated region
        $region56: #{rsu4_forward.11} parent=50 // pred_check
          %p328 = pneg %p100
        $region57: #{rsu4_forward.11} parent=50 // pred_check_branch
          %330 = sbr.rel (%p328) target = $region59
        $region58: #{rsu4_forward.11} parent=50 // pred_region
          %s331 = smul.u32 2, %s14
          %s332 = smul.addr %s331, 8
          %s333 = scalar_lea.vmem %s3, %s332
          // Predicated region
          $region60: #{rsu4_forward.11} parent=58 // pred_check
            _
          $region61: #{rsu4_forward.11} parent=58 // pred_check_branch
            %335 = sbr.rel (0) target = $region63
          $region62: #{rsu4_forward.11} parent=58 // pred_region
            // Predicated region
            $region64: #{rsu4_forward.11} parent=62 // pred_check
              _
            $region65: #{rsu4_forward.11} parent=62 // pred_check_branch
              %337 = sbr.rel (0) target = $region67
            $region66: #{rsu4_forward.11} parent=62 // pred_region
              loop: start=0, step=1, limit=1
              $region68: #{rsu4_forward.11} parent=66 // loop_pre_header
                _
              $region69: #{rsu4_forward.11} parent=66 // loop_header
                %s339 = sphi 0, %s343
                %p340 = scmp.ge.s32.totalorder %s339, 1
                %s344 = sphi %s327, %s327
                %s345 = sphi %s333, %s333
              $region70: #{rsu4_forward.11} parent=66 // loop_header_branch
                %342 = sbr.rel (%p340) target = $region74
              $region71: #{rsu4_forward.11} parent=66 // loop_body
                %v346 = vld [vmem:[%s344] sm:$0xff]
                %347 = vst [vmem:[%s345] sm:$0xff] %v346
                %v348 = vld [vmem:[%s344 + $0x8] sm:$0xff]
                %349 = vst [vmem:[%s345 + $0x8] sm:$0xff] %v348
                %v350 = vld [vmem:[%s344 + $0x10] sm:$0xff]
                %351 = vst [vmem:[%s345 + $0x20] sm:$0xff] %v350
                %v352 = vld [vmem:[%s344 + $0x18] sm:$0xff]
                %353 = vst [vmem:[%s345 + $0x28] sm:$0xff] %v352
              $region72: #{rsu4_forward.11} parent=66 // loop_footer
                %s343 = sadd.s32 1, %s339
              $region73: #{rsu4_forward.11} parent=66 // loop_footer_branch
                %338 = sbr.rel target = $region69
              $region74: #{rsu4_forward.11} parent=66 // loop_exit
                _
            $region67: #{rsu4_forward.11} parent=62 // pred_fallthru
              _
            // Predicated region
            $region75: #{rsu4_forward.11} parent=62 // pred_check
              _
            $region76: #{rsu4_forward.11} parent=62 // pred_check_branch
              %355 = sbr.rel target = $region78
            $region77: #{rsu4_forward.11} parent=62 // pred_region
              _
            $region78: #{rsu4_forward.11} parent=62 // pred_fallthru
              _
          $region63: #{rsu4_forward.11} parent=58 // pred_fallthru
            _
          %356 = vnop
        $region59: #{rsu4_forward.11} parent=50 // pred_fallthru
          _
      $region51: #{rsu4_forward.11} parent=5 // pred_fallthru
        _
      %p357 = scmp.le.s32.totalorder 2, %s9
      // Predicated region
      $region79: #{rsu4_forward.11} parent=5 // pred_check
        %p358 = pneg %p357
      $region80: #{rsu4_forward.11} parent=5 // pred_check_branch
        %360 = sbr.rel (%p358) target = $region82
      $region81: #{rsu4_forward.11} parent=5 // pred_region
        %s361 = ssub.s32 %s9, 2
        // Predicated region
        $region83: #{rsu4_forward.11} parent=81 // pred_check
          %p362 = pneg %p106
        $region84: #{rsu4_forward.11} parent=81 // pred_check_branch
          %364 = sbr.rel (%p362) target = $region86
        $region85: #{rsu4_forward.11} parent=81 // pred_region
          %s365 = sand.u32 %s91, 1
          %s366 = sand.u32 %s91, 1
          %s367 = smul.addr %s366, 32
          %s368 = scalar_lea.vmem [#allocation3], %s367
        $region86: #{rsu4_forward.11} parent=81 // pred_fallthru
          _
      $region82: #{rsu4_forward.11} parent=5 // pred_fallthru
        _
    $region6: #{rsu4_forward.11} parent=1 // loop_footer
      %s13 = sadd.s32 1, %s9
    $region7: #{rsu4_forward.11} parent=1 // loop_footer_branch
      %8 = sbr.rel target = $region3
    $region8: #{rsu4_forward.11} parent=1 // loop_exit
      _

// kernel: rsu4_forward.10
$region0: #{rsu4_forward.10}
  #allocation0 [shape = 'u32[]', space=smem, size = 0x4, offset = 0x4, fixed_abs, tag = 'smem constant byte address 0x4 - core index']
  #allocation1 [shape = 'u32[144,128]{1,0:T(1,128)}', space=vmem, size = 0x12000, scoped, tag = 'internal scratch']
  %s0 = inlined_call_operand.hbm [shape: bf16[3,27], index: 0, kind: input, shape index: {}]
  %s1 = inlined_call_operand.vmem [shape: f32[27,512], index: 1, kind: input, shape index: {}]
  %s2 = inlined_call_operand.vmem [shape: f32[3,1], index: 2, kind: input, shape index: {}]
  %s3 = inlined_call_operand.vmem [shape: f32[3,512], index: 3, kind: output, shape index: {}]
  %s4 = sld [smem:[#allocation0]]
  $region72: #{rsu4_forward.10} parent=0
    _
  %s6 = ssub.s32 1, %s4
  %s7 = scalar_select 0, %s6, %s4
  $region1: #{rsu4_forward.10} parent=0
    #allocation2 [shape = 'u8[1024]{0}', space=vmem, size = 0x400, scoped, tag = 'input window, operand 0, single buffered']
    #allocation3 [shape = 's32[2]{0}', space=sflag, size = 0x8, scoped, tag = 'scoped memory for rsu4_forward.10']
    #allocation4 [shape = 'u8[65536]{0}', space=vmem, size = 0x10000, scoped, tag = 'input window, operand 1']
    %8 = vsyncpa [#allocation3], 0
    loop: start=0, step=1, limit=4
    $region2: #{rsu4_forward.10} parent=1 // loop_pre_header
      _
    $region3: #{rsu4_forward.10} parent=1 // loop_header
      %s10 = sphi 0, %s14
      %p11 = scmp.ge.s32.totalorder %s10, 4
      %s18 = sphi 0, %s18
      %s20 = sphi 0, %s18
      %s21 = sphi 0, %s20
      %s35 = sphi 0, %s21
      %s41 = sphi 0, %s43
      %s44 = sphi 0, %s41
      %s45 = sphi 0, %s44
      %s61 = sphi 0, %s45
      %s65 = sphi 0, %s65
      %s67 = sphi 0, %s65
      %s68 = sphi 0, %s67
      %s82 = sphi 0, %s68
      %s88 = sphi 0, %s90
      %s91 = sphi 0, %s88
      %s92 = sphi 0, %s91
      %s108 = sphi 0, %s92
    $region4: #{rsu4_forward.10} parent=1 // loop_header_branch
      %13 = sbr.rel (%p11) target = $region8
    $region5: #{rsu4_forward.10} parent=1 // loop_body
      %s15 = ssub.s32 %s10, 1
      %s16 = ssub.s32 %s10, 2
      %s17 = sadd.s32 %s10, 1
      %s19 = sadd.s32 %s18, 1
      %p22 = scmp.eq.s32.totalorder %s10, 1
      %p23 = scmp.ne.s32.totalorder %s18, %s20
      %p24 = scmp.eq.s32.totalorder %s10, 0
      %p25 = por %p23, %p24
      %p26 = scmp.ne.s32.totalorder %s18, %s20
      %p27 = scmp.eq.s32.totalorder %s15, 1
      %p28 = por %p26, %p27
      %p29 = scmp.ne.s32.totalorder %s20, %s21
      %p30 = scmp.eq.s32.totalorder %s15, 0
      %p31 = por %p29, %p30
      %p32 = scmp.ne.s32.totalorder %s20, %s21
      %p33 = scmp.eq.s32.totalorder %s16, 1
      %p34 = por %p32, %p33
      %p36 = scmp.ne.s32.totalorder %s21, %s35
      %p37 = scmp.eq.s32.totalorder %s16, 0
      %p38 = por %p36, %p37
      %s39 = ssub.s32 %s10, %s17
      %p40 = scmp.eq.s32.totalorder %s39, 0
      %s42 = sadd.s32 %s41, 1
      %s43 = scalar_select %p40, %s41, %s42
      %p46 = pneg %p40
      %p47 = scmp.eq.s32.totalorder %s10, 1
      %p48 = por %p46, %p47
      %p49 = scmp.ne.s32.totalorder %s41, %s44
      %p50 = scmp.eq.s32.totalorder %s10, 0
      %p51 = por %p49, %p50
      %p52 = scmp.ne.s32.totalorder %s41, %s44
      %p53 = scmp.eq.s32.totalorder %s15, 1
      %p54 = por %p52, %p53
      %p55 = scmp.ne.s32.totalorder %s44, %s45
      %p56 = scmp.eq.s32.totalorder %s15, 0
      %p57 = por %p55, %p56
      %p58 = scmp.ne.s32.totalorder %s44, %s45
      %p59 = scmp.eq.s32.totalorder %s16, 1
      %p60 = por %p58, %p59
      %p62 = scmp.ne.s32.totalorder %s45, %s61
      %p63 = scmp.eq.s32.totalorder %s16, 0
      %p64 = por %p62, %p63
      %s66 = sadd.s32 %s65, 1
      %p69 = scmp.eq.s32.totalorder %s10, 1
      %p70 = scmp.ne.s32.totalorder %s65, %s67
      %p71 = scmp.eq.s32.totalorder %s10, 0
      %p72 = por %p70, %p71
      %p73 = scmp.ne.s32.totalorder %s65, %s67
      %p74 = scmp.eq.s32.totalorder %s15, 1
      %p75 = por %p73, %p74
      %p76 = scmp.ne.s32.totalorder %s67, %s68
      %p77 = scmp.eq.s32.totalorder %s15, 0
      %p78 = por %p76, %p77
      %p79 = scmp.ne.s32.totalorder %s67, %s68
      %p80 = scmp.eq.s32.totalorder %s16, 1
      %p81 = por %p79, %p80
      %p83 = scmp.ne.s32.totalorder %s68, %s82
      %p84 = scmp.eq.s32.totalorder %s16, 0
      %p85 = por %p83, %p84
      %s86 = ssub.s32 %s10, %s17
      %p87 = scmp.eq.s32.totalorder %s86, 0
      %s89 = sadd.s32 %s88, 1
      %s90 = scalar_select %p87, %s88, %s89
      %p93 = pneg %p87
      %p94 = scmp.eq.s32.totalorder %s10, 1
      %p95 = por %p93, %p94
      %p96 = scmp.ne.s32.totalorder %s88, %s91
      %p97 = scmp.eq.s32.totalorder %s10, 0
      %p98 = por %p96, %p97
      %p99 = scmp.ne.s32.totalorder %s88, %s91
      %p100 = scmp.eq.s32.totalorder %s15, 1
      %p101 = por %p99, %p100
      %p102 = scmp.ne.s32.totalorder %s91, %s92
      %p103 = scmp.eq.s32.totalorder %s15, 0
      %p104 = por %p102, %p103
      %p105 = scmp.ne.s32.totalorder %s91, %s92
      %p106 = scmp.eq.s32.totalorder %s16, 1
      %p107 = por %p105, %p106
      %p109 = scmp.ne.s32.totalorder %s92, %s108
      %p110 = scmp.eq.s32.totalorder %s16, 0
      %p111 = por %p109, %p110
      %p112 = scmp.le.s32.totalorder 1, %s10
      %p113 = scmp.lt.s32.totalorder %s10, 3
      %p114 = pnand %p112, %p113
      %p115 = pneg %p114
      // Predicated region
      $region9: #{rsu4_forward.10} parent=5 // pred_check
        _
      $region10: #{rsu4_forward.10} parent=5 // pred_check_branch
        %117 = sbr.rel (%p114) target = $region12
      $region11: #{rsu4_forward.10} parent=5 // pred_region
        %s118 = ssub.s32 %s10, 1
        // Predicated region
        $region13: #{rsu4_forward.10} parent=11 // pred_check
          %p119 = pneg %p31
        $region14: #{rsu4_forward.10} parent=11 // pred_check_branch
          %121 = sbr.rel (%p119) target = $region16
        $region15: #{rsu4_forward.10} parent=11 // pred_region
          %s123 = ssub.s32 32, 32
          %124 = vsyncadd [#allocation3], %s123
          %s126 = sshll.u32 [#allocation2], 4
          %s127 = int_to_ptr.vmem [resolvable:$true] %s126
          %129 = dma.hbm_to_vmem [thread:$0]  %s0, 32, %s127, [#allocation3]
        $region16: #{rsu4_forward.10} parent=11 // pred_fallthru
          _
        // Predicated region
        $region17: #{rsu4_forward.10} parent=11 // pred_check
          %p130 = pneg %p78
        $region18: #{rsu4_forward.10} parent=11 // pred_check_branch
          %132 = sbr.rel (%p130) target = $region20
        $region19: #{rsu4_forward.10} parent=11 // pred_region
          _
        $region20: #{rsu4_forward.10} parent=11 // pred_fallthru
          _
      $region12: #{rsu4_forward.10} parent=5 // pred_fallthru
        _
      %p133 = scmp.lt.s32.totalorder %s10, 2
      // Predicated region
      $region21: #{rsu4_forward.10} parent=5 // pred_check
        %p134 = pneg %p133
      $region22: #{rsu4_forward.10} parent=5 // pred_check_branch
        %136 = sbr.rel (%p134) target = $region24
      $region23: #{rsu4_forward.10} parent=5 // pred_region
        // Predicated region
        $region25: #{rsu4_forward.10} parent=23 // pred_check
          %p137 = pneg %p51
        $region26: #{rsu4_forward.10} parent=23 // pred_check_branch
          %139 = sbr.rel (%p137) target = $region28
        $region27: #{rsu4_forward.10} parent=23 // pred_region
          %s140 = sand.u32 %s41, 1
          %s141 = sand.u32 %s41, 1
          %s142 = smul.addr %s141, 64
          %s143 = scalar_lea.vmem [#allocation4], %s142
          %s144 = smul.u32 2, %s10
          %s145 = smul.addr %s144, 8
          %s146 = scalar_lea.vmem %s1, %s145
          // Predicated region
          $region29: #{rsu4_forward.10} parent=27 // pred_check
            _
          $region30: #{rsu4_forward.10} parent=27 // pred_check_branch
            %148 = sbr.rel (0) target = $region32
          $region31: #{rsu4_forward.10} parent=27 // pred_region
            // Predicated region
            $region33: #{rsu4_forward.10} parent=31 // pred_check
              _
            $region34: #{rsu4_forward.10} parent=31 // pred_check_branch
              %150 = sbr.rel (0) target = $region36
            $region35: #{rsu4_forward.10} parent=31 // pred_region
              loop: start=0, step=1, limit=1
              $region37: #{rsu4_forward.10} parent=35 // loop_pre_header
                _
              $region38: #{rsu4_forward.10} parent=35 // loop_header
                %s152 = sphi 0, %s156
                %p153 = scmp.ge.s32.totalorder %s152, 1
                %s157 = sphi %s146, %s146
                %s158 = sphi %s143, %s143
              $region39: #{rsu4_forward.10} parent=35 // loop_header_branch
                %155 = sbr.rel (%p153) target = $region43
              $region40: #{rsu4_forward.10} parent=35 // loop_body
                %v159 = vld [vmem:[%s157] sm:$0xff]
                %160 = vst [vmem:[%s158] sm:$0xff] %v159
                %v161 = vld [vmem:[%s157 + $0x8] sm:$0xff]
                %162 = vst [vmem:[%s158 + $0x8] sm:$0xff] %v161
                %v163 = vld [vmem:[%s157 + $0x20] sm:$0xff]
                %164 = vst [vmem:[%s158 + $0x10] sm:$0xff] %v163
                %v165 = vld [vmem:[%s157 + $0x28] sm:$0xff]
                %166 = vst [vmem:[%s158 + $0x18] sm:$0xff] %v165
                %v167 = vld [vmem:[%s157 + $0x40] sm:$0xff]
                %168 = vst [vmem:[%s158 + $0x20] sm:$0xff] %v167
                %v169 = vld [vmem:[%s157 + $0x48] sm:$0xff]
                %170 = vst [vmem:[%s158 + $0x28] sm:$0xff] %v169
                %v171 = vld [vmem:[%s157 + $0x60] sm:$0xff]
                %172 = vst [vmem:[%s158 + $0x30] sm:$0xff] %v171
                %v173 = vld [vmem:[%s157 + $0x68] sm:$0xff]
                %174 = vst [vmem:[%s158 + $0x38] sm:$0xff] %v173
              $region41: #{rsu4_forward.10} parent=35 // loop_footer
                %s156 = sadd.s32 1, %s152
              $region42: #{rsu4_forward.10} parent=35 // loop_footer_branch
                %151 = sbr.rel target = $region38
              $region43: #{rsu4_forward.10} parent=35 // loop_exit
                _
            $region36: #{rsu4_forward.10} parent=31 // pred_fallthru
              _
            // Predicated region
            $region44: #{rsu4_forward.10} parent=31 // pred_check
              _
            $region45: #{rsu4_forward.10} parent=31 // pred_check_branch
              %176 = sbr.rel target = $region47
            $region46: #{rsu4_forward.10} parent=31 // pred_region
              _
            $region47: #{rsu4_forward.10} parent=31 // pred_fallthru
              _
          $region32: #{rsu4_forward.10} parent=27 // pred_fallthru
            _
          %177 = vnop
        $region28: #{rsu4_forward.10} parent=23 // pred_fallthru
          _
      $region24: #{rsu4_forward.10} parent=5 // pred_fallthru
        _
      %p178 = scmp.le.s32.totalorder 1, %s10
      %p179 = scmp.lt.s32.totalorder %s10, 3
      %p180 = pnand %p178, %p179
      %p181 = pneg %p180
      // Predicated region
      $region48: #{rsu4_forward.10} parent=5 // pred_check
        _
      $region49: #{rsu4_forward.10} parent=5 // pred_check_branch
        %183 = sbr.rel (%p180) target = $region51
      $region50: #{rsu4_forward.10} parent=5 // pred_region
        %s184 = ssub.s32 %s10, 1
        // Predicated region
        $region52: #{rsu4_forward.10} parent=50 // pred_check
          %p185 = pneg %p31
        $region53: #{rsu4_forward.10} parent=50 // pred_check_branch
          %187 = sbr.rel (%p185) target = $region55
        $region54: #{rsu4_forward.10} parent=50 // pred_region
          %188 = dma.done [#allocation3], 32
        $region55: #{rsu4_forward.10} parent=50 // pred_fallthru
          _
        %s189 = sand.u32 %s44, 1
        %s190 = sand.u32 %s44, 1
        %s191 = smul.addr %s190, 64
        %s192 = scalar_lea.vmem [#allocation4], %s191
        // Predicated region
        $region56: #{rsu4_forward.10} parent=50 // pred_check
          %p193 = pneg %p57
        $region57: #{rsu4_forward.10} parent=50 // pred_check_branch
          %195 = sbr.rel (%p193) target = $region59
        $region58: #{rsu4_forward.10} parent=50 // pred_region
          _
        $region59: #{rsu4_forward.10} parent=50 // pred_fallthru
          _
        %p196 = pneg %p31
        %p197 = pneg %p28
        %s198 = sand.u32 %s44, 1
        %s199 = sand.u32 %s44, 1
        %s200 = smul.addr %s199, 64
        %s201 = scalar_lea.vmem [#allocation4], %s200
        %p202 = pneg %p57
        %p203 = pneg %p54
        %p204 = pneg %p78
        %p205 = pneg %p75
        %p206 = pneg %p104
        %p207 = pneg %p101
        %s208 = smul.u32 2, %s15
        %p209 = scmp.lt.s32.totalorder %s208, 3
        %s210 = scalar_select %p209, %s208, 3
        %s211 = smul.addr %s210, 4
        %s212 = scalar_lea.vmem %s3, %s211
        %s213 = smul.u32 2, %s15
        %s214 = smul.u32 2, %s15
        %p215 = scmp.lt.s32.totalorder %s214, 3
        %s216 = scalar_select %p215, %s214, 3
        %s217 = smul.addr %s216, 4
        %s218 = scalar_lea.vmem %s3, %s217
        %s219 = smul.u32 2, %s15
        %v220 = vld [vmem:[#allocation2] sm:$0x3]
        %v221 = vunpack.c.l.bf16 %v220
        %v222 = vld [vmem:[%s192] sm:$0xff]
        %v223 = vld [vmem:[%s192 + $0x8] sm:$0xff]
        %v224 = vld [vmem:[%s192 + $0x10] sm:$0xff]
        %v225 = vld [vmem:[%s192 + $0x18] sm:$0xff]
        %v226 = vld [vmem:[%s192 + $0x20] sm:$0xff]
        %v227 = vld [vmem:[%s192 + $0x28] sm:$0xff]
        %v228 = vld [vmem:[%s192 + $0x30] sm:$0x7]
        %v229 = vld [vmem:[%s192 + $0x38] sm:$0x7]
        %v230 = vld [vmem:[%s2] sm:$0x7]
        %232 = vset.pattern.permute.xlu0 0
        %233 = vperm.xlu0 %232, %v230
        %v234 = vpop.permute.xlu0 %233
        %vm236 = vcmask 220160
        %v238 = vsel %vm236, %v221, 0
        %vm240 = vcmask 1042432
        %v242 = vsel %vm240, %v228, 0
        %v245 = vsel %vm240, %v229, 0
        %247 = vmatprep.subr.mxu0 %v223
        %248 = vmatpush1.msra.mxu0 %v222
        %249 = vmatprep.subr.mxu0 %v225
        %250 = vmatpush1.msra.mxu0 %v224
        %251 = vmatprep.subr.mxu0 %v227
        %252 = vmatpush1.msra.mxu0 %v226
        %253 = vmatprep.subr.mxu0 %v245
        %254 = vmatpush1.msra.mxu0 %v242
        %255 = vmatprep.subr.mxu0 0.0
        %256 = vmatpush1.msra.mxu0 0.0
        %257 = vmatprep.subr.mxu0 0.0
        %258 = vmatpush1.msra.mxu0 0.0
        %259 = vmatprep.subr.mxu0 0.0
        %260 = vmatpush1.msra.mxu0 0.0
        %261 = vmatprep.subr.mxu0 0.0
        %262 = vmatpush1.msra.mxu0 0.0
        %263 = vmatprep.subr.mxu0 0.0
        %264 = vmatpush1.msra.mxu0 0.0
        %265 = vmatprep.subr.mxu0 0.0
        %266 = vmatpush1.msra.mxu0 0.0
        %267 = vmatprep.subr.mxu0 0.0
        %268 = vmatpush1.msra.mxu0 0.0
        %269 = vmatprep.subr.mxu0 0.0
        %270 = vmatpush1.msra.mxu0 0.0
        %271 = vmatprep.subr.mxu0 0.0
        %272 = vmatpush1.msra.mxu0 0.0
        %273 = vmatprep.subr.mxu0 0.0
        %274 = vmatpush1.msra.mxu0 0.0
        %275 = vmatprep.subr.mxu0 0.0
        %276 = vmatpush1.msra.mxu0 0.0
        %277 = vmatprep.subr.mxu0 0.0
        %278 = vmatpush1.msra.mxu0 0.0
        %279 = vmatprep.subr.mxu0 0.0
        %280 = vmatpush1.msra.mxu0 0.0
        %281 = vmatprep.subr.mxu0 0.0
        %282 = vmatpush1.msra.mxu0 0.0
        %283 = vmatprep.subr.mxu0 0.0
        %284 = vmatpush1.msra.mxu0 0.0
        %285 = vmatprep.subr.mxu0 0.0
        %286 = vmatpush1.msra.mxu0 0.0
        %287 = vmatprep.subr.mxu0 0.0
        %288 = vmatpush1.msra.mxu0 0.0
        %289 = vmatprep.subr.mxu0 0.0
        %290 = vmatpush1.msra.mxu0 0.0
        %291 = vmatprep.subr.mxu0 0.0
        %292 = vmatpush1.msra.mxu0 0.0
        %293 = vmatprep.subr.mxu0 0.0
        %294 = vmatpush1.msra.mxu0 0.0
        %295 = vmatprep.subr.mxu0 0.0
        %296 = vmatpush1.msra.mxu0 0.0
        %297 = vmatprep.subr.mxu0 0.0
        %298 = vmatpush1.msra.mxu0 0.0
        %299 = vmatprep.subr.mxu0 0.0
        %300 = vmatpush1.msra.mxu0 0.0
        %301 = vmatprep.subr.mxu0 0.0
        %302 = vmatpush1.msra.mxu0 0.0
        %303 = vmatprep.subr.mxu0 0.0
        %304 = vmatpush1.msra.mxu0 0.0
        %305 = vmatprep.subr.mxu0 0.0
        %306 = vmatpush1.msra.mxu0 0.0
        %307 = vmatprep.subr.mxu0 0.0
        %308 = vmatpush1.msra.mxu0 0.0
        %309 = vmatprep.subr.mxu0 0.0
        %310 = vmatpush1.msra.mxu0 0.0
        %311 = vmatprep.mubr.f32.mxu0 0.0
        %312 = vmatmul.mubr.f32.gmra.mrb[0].mxu0 %v238
        %v313 = vpop.f32.mrb[0].mxu0
        %v314 = vadd.f32 %v234, %v313
        %v315 = vpop.f32.mrb[0].mxu0
        %v316 = vadd.f32 %v234, %v315
        %317 = vdwg.mxu0
        %v318 = vmax.f32 %v314, 0.0
        %v319 = vmax.f32 %v316, 0.0
        %v322 = vcombine.low %v318, %v319
        %324 = vst [vmem:[%s218] sm:$0x77] %v322
        %s325 = smul.u32 2, %s15
        %p326 = scmp.lt.s32.totalorder %s325, 3
        %s327 = scalar_select %p326, %s325, 3
        %s328 = smul.addr %s327, 4
        %s329 = scalar_lea.vmem %s3, %s328
        // Predicated region
        $region60: #{rsu4_forward.10} parent=50 // pred_check
          %p330 = pneg %p101
        $region61: #{rsu4_forward.10} parent=50 // pred_check_branch
          %332 = sbr.rel (%p330) target = $region63
        $region62: #{rsu4_forward.10} parent=50 // pred_region
          %s333 = smul.u32 2, %s15
        $region63: #{rsu4_forward.10} parent=50 // pred_fallthru
          _
      $region51: #{rsu4_forward.10} parent=5 // pred_fallthru
        _
      %p334 = scmp.le.s32.totalorder 2, %s10
      // Predicated region
      $region64: #{rsu4_forward.10} parent=5 // pred_check
        %p335 = pneg %p334
      $region65: #{rsu4_forward.10} parent=5 // pred_check_branch
        %337 = sbr.rel (%p335) target = $region67
      $region66: #{rsu4_forward.10} parent=5 // pred_region
        %s338 = ssub.s32 %s10, 2
        // Predicated region
        $region68: #{rsu4_forward.10} parent=66 // pred_check
          %p339 = pneg %p107
        $region69: #{rsu4_forward.10} parent=66 // pred_check_branch
          %341 = sbr.rel (%p339) target = $region71
        $region70: #{rsu4_forward.10} parent=66 // pred_region
          %s342 = smul.u32 2, %s16
          %p343 = scmp.lt.s32.totalorder %s342, 3
          %s344 = scalar_select %p343, %s342, 3
          %s345 = smul.addr %s344, 4
          %s346 = scalar_lea.vmem %s3, %s345
        $region71: #{rsu4_forward.10} parent=66 // pred_fallthru
          _
      $region67: #{rsu4_forward.10} parent=5 // pred_fallthru
        _
    $region6: #{rsu4_forward.10} parent=1 // loop_footer
      %s14 = sadd.s32 1, %s10
    $region7: #{rsu4_forward.10} parent=1 // loop_footer_branch
      %9 = sbr.rel target = $region3
    $region8: #{rsu4_forward.10} parent=1 // loop_exit
      _
    %347 = vsyncpa [#allocation3], 1
    %s348 = scalar_lea.sflag [#allocation3], 1
    %349 = vsyncpa %s348, 1

// kernel: rsu4_forward.12
$region0: #{rsu4_forward.12}
  #allocation0 [shape = 'u32[]', space=smem, size = 0x4, offset = 0x4, fixed_abs, tag = 'smem constant byte address 0x4 - core index']
  #allocation1 [shape = 'u32[144,128]{1,0:T(1,128)}', space=vmem, size = 0x12000, scoped, tag = 'internal scratch']
  %s0 = inlined_call_operand.vmem [shape: bf16[12,108], index: 0, kind: input, shape index: {}]
  %s1 = inlined_call_operand.vmem [shape: f32[108,128], index: 1, kind: input, shape index: {}]
  %s2 = inlined_call_operand.vmem [shape: f32[12,1], index: 2, kind: input, shape index: {}]
  %s3 = inlined_call_operand.vmem [shape: f32[12,128], index: 3, kind: output, shape index: {}]
  %s4 = sld [smem:[#allocation0]]
  $region22: #{rsu4_forward.12} parent=0
    _
  %s6 = ssub.s32 1, %s4
  %s7 = scalar_select 0, %s6, %s4
  // Predicated region
  $region2: #{rsu4_forward.12} parent=0 // pred_check
    _
  $region3: #{rsu4_forward.12} parent=0 // pred_check_branch
    %9 = sbr.rel (0) target = $region5
  $region4: #{rsu4_forward.12} parent=0 // pred_region
    _
  $region5: #{rsu4_forward.12} parent=0 // pred_fallthru
    _
  // Predicated region
  $region6: #{rsu4_forward.12} parent=0 // pred_check
    _
  $region7: #{rsu4_forward.12} parent=0 // pred_check_branch
    %11 = sbr.rel (0) target = $region9
  $region8: #{rsu4_forward.12} parent=0 // pred_region
    _
  $region9: #{rsu4_forward.12} parent=0 // pred_fallthru
    _
  // Predicated region
  $region10: #{rsu4_forward.12} parent=0 // pred_check
    _
  $region11: #{rsu4_forward.12} parent=0 // pred_check_branch
    %13 = sbr.rel (0) target = $region13
  $region12: #{rsu4_forward.12} parent=0 // pred_region
    _
  $region13: #{rsu4_forward.12} parent=0 // pred_fallthru
    _
  %v14 = vld [vmem:[%s0] sm:$0xf]
  %v15 = vld [vmem:[%s0 + $0x4] sm:$0x3]
  %v16 = vunpack.c.l.bf16 %v14
  %v17 = vunpack.c.l.bf16 %v15
  %v18 = vld [vmem:[%s1] sm:$0xff]
  %v19 = vld [vmem:[%s1 + $0x8] sm:$0xff]
  %v20 = vld [vmem:[%s1 + $0x10] sm:$0xff]
  %v21 = vld [vmem:[%s1 + $0x18] sm:$0xff]
  %v22 = vld [vmem:[%s1 + $0x20] sm:$0xff]
  %v23 = vld [vmem:[%s1 + $0x28] sm:$0xff]
  %v24 = vld [vmem:[%s1 + $0x30] sm:$0xff]
  %v25 = vld [vmem:[%s1 + $0x38] sm:$0xff]
  %v26 = vld [vmem:[%s1 + $0x40] sm:$0xff]
  %v27 = vld [vmem:[%s1 + $0x48] sm:$0xff]
  %v28 = vld [vmem:[%s1 + $0x50] sm:$0xff]
  %v29 = vld [vmem:[%s1 + $0x58] sm:$0xff]
  %v30 = vld [vmem:[%s1 + $0x60] sm:$0xff]
  %v31 = vld [vmem:[%s1 + $0x68] sm:$0xf]
  %v32 = vld [vmem:[%s2] sm:$0xff]
  %v33 = vld [vmem:[%s2 + $0x8] sm:$0xf]
  %35 = vset.pattern.permute.xlu0 0
  %36 = vperm.xlu0 %35, %v32
  %v37 = vpop.permute.xlu0 %36
  %40 = vset.pattern.permute.xlu0 0
  %41 = vperm.xlu0 %40, %v33
  %v42 = vpop.permute.xlu0 %41
  %vm44 = vcmask 883712
  %v46 = vsel %vm44, %v16, 0
  %v49 = vsel %vm44, %v17, 0
  %vm51 = vcmask 1043456
  %v53 = vsel %vm51, %v31, 0
  %55 = vmatprep.subr.mxu0 0.0
  %56 = vmatpush1.msra.mxu0 %v18
  %57 = vmatprep.subr.mxu0 0.0
  %58 = vmatpush1.msra.mxu0 %v19
  %59 = vmatprep.subr.mxu0 0.0
  %60 = vmatpush1.msra.mxu0 %v20
  %61 = vmatprep.subr.mxu0 0.0
  %62 = vmatpush1.msra.mxu0 %v21
  %63 = vmatprep.subr.mxu0 0.0
  %64 = vmatpush1.msra.mxu0 %v22
  %65 = vmatprep.subr.mxu0 0.0
  %66 = vmatpush1.msra.mxu0 %v23
  %67 = vmatprep.subr.mxu0 0.0
  %68 = vmatpush1.msra.mxu0 %v24
  %69 = vmatprep.subr.mxu0 0.0
  %70 = vmatpush1.msra.mxu0 %v25
  %71 = vmatprep.subr.mxu0 0.0
  %72 = vmatpush1.msra.mxu0 %v26
  %73 = vmatprep.subr.mxu0 0.0
  %74 = vmatpush1.msra.mxu0 %v27
  %75 = vmatprep.subr.mxu0 0.0
  %76 = vmatpush1.msra.mxu0 %v28
  %77 = vmatprep.subr.mxu0 0.0
  %78 = vmatpush1.msra.mxu0 %v29
  %79 = vmatprep.subr.mxu0 0.0
  %80 = vmatpush1.msra.mxu0 %v30
  %81 = vmatprep.subr.mxu0 0.0
  %82 = vmatpush1.msra.mxu0 %v53
  %83 = vmatprep.subr.mxu0 0.0
  %84 = vmatpush1.msra.mxu0 0.0
  %85 = vmatprep.subr.mxu0 0.0
  %86 = vmatpush1.msra.mxu0 0.0
  %87 = vmatprep.subr.mxu0 0.0
  %88 = vmatpush1.msra.mxu0 0.0
  %89 = vmatprep.subr.mxu0 0.0
  %90 = vmatpush1.msra.mxu0 0.0
  %91 = vmatprep.subr.mxu0 0.0
  %92 = vmatpush1.msra.mxu0 0.0
  %93 = vmatprep.subr.mxu0 0.0
  %94 = vmatpush1.msra.mxu0 0.0
  %95 = vmatprep.subr.mxu0 0.0
  %96 = vmatpush1.msra.mxu0 0.0
  %97 = vmatprep.subr.mxu0 0.0
  %98 = vmatpush1.msra.mxu0 0.0
  %99 = vmatprep.subr.mxu0 0.0
  %100 = vmatpush1.msra.mxu0 0.0
  %101 = vmatprep.subr.mxu0 0.0
  %102 = vmatpush1.msra.mxu0 0.0
  %103 = vmatprep.subr.mxu0 0.0
  %104 = vmatpush1.msra.mxu0 0.0
  %105 = vmatprep.subr.mxu0 0.0
  %106 = vmatpush1.msra.mxu0 0.0
  %107 = vmatprep.subr.mxu0 0.0
  %108 = vmatpush1.msra.mxu0 0.0
  %109 = vmatprep.subr.mxu0 0.0
  %110 = vmatpush1.msra.mxu0 0.0
  %111 = vmatprep.subr.mxu0 0.0
  %112 = vmatpush1.msra.mxu0 0.0
  %113 = vmatprep.subr.mxu0 0.0
  %114 = vmatpush1.msra.mxu0 0.0
  %115 = vmatprep.subr.mxu0 0.0
  %116 = vmatpush1.msra.mxu0 0.0
  %117 = vmatprep.subr.mxu0 0.0
  %118 = vmatpush1.msra.mxu0 0.0
  %119 = vmatprep.mubr.f32.mxu0 0.0
  %120 = vmatmul.mubr.f32.gmra.mrb[0].mxu0 %v46
  %v121 = vpop.f32.mrb[0].mxu0
  %v122 = vadd.f32 %v37, %v121
  %v123 = vpop.f32.mrb[0].mxu0
  %124 = vmatprep.mubr.f32.mxu0 0.0
  %125 = vmatmul.mubr.f32.gmra.mrb[0].mxu0 %v49
  %v126 = vpop.f32.mrb[0].mxu0
  %v127 = vadd.f32 %v42, %v126
  %v128 = vpop.f32.mrb[0].mxu0
  %129 = vdwg.mxu0
  %v130 = vmax.f32 %v122, 0.0
  %v131 = vmax.f32 %v127, 0.0
  %132 = vst [vmem:[%s3] sm:$0xff] %v130
  %133 = vst [vmem:[%s3 + $0x8] sm:$0xf] %v131
  // Predicated region
  $region14: #{rsu4_forward.12} parent=0 // pred_check
    _
  $region15: #{rsu4_forward.12} parent=0 // pred_check_branch
    %135 = sbr.rel (0) target = $region17
  $region16: #{rsu4_forward.12} parent=0 // pred_region
    _
  $region17: #{rsu4_forward.12} parent=0 // pred_fallthru
    _
  // Predicated region
  $region18: #{rsu4_forward.12} parent=0 // pred_check
    _
  $region19: #{rsu4_forward.12} parent=0 // pred_check_branch
    %137 = sbr.rel (0) target = $region21
  $region20: #{rsu4_forward.12} parent=0 // pred_region
    _
  $region21: #{rsu4_forward.12} parent=0 // pred_fallthru
    _

// kernel: rsu4_forward.13
$region0: #{rsu4_forward.13}
  #allocation0 [shape = 'u32[]', space=smem, size = 0x4, offset = 0x4, fixed_abs, tag = 'smem constant byte address 0x4 - core index']
  #allocation1 [shape = 'u32[144,128]{1,0:T(1,128)}', space=vmem, size = 0x12000, scoped, tag = 'internal scratch']
  %s0 = inlined_call_operand.vmem [shape: bf16[12,108], index: 0, kind: input, shape index: {}]
  %s1 = inlined_call_operand.vmem [shape: f32[108,32], index: 1, kind: input, shape index: {}]
  %s2 = inlined_call_operand.vmem [shape: f32[12,1], index: 2, kind: input, shape index: {}]
  %s3 = inlined_call_operand.vmem [shape: f32[12,32], index: 3, kind: output, shape index: {}]
  %s4 = sld [smem:[#allocation0]]
  $region22: #{rsu4_forward.13} parent=0
    _
  %s6 = ssub.s32 1, %s4
  %s7 = scalar_select 0, %s6, %s4
  // Predicated region
  $region2: #{rsu4_forward.13} parent=0 // pred_check
    _
  $region3: #{rsu4_forward.13} parent=0 // pred_check_branch
    %9 = sbr.rel (0) target = $region5
  $region4: #{rsu4_forward.13} parent=0 // pred_region
    _
  $region5: #{rsu4_forward.13} parent=0 // pred_fallthru
    _
  // Predicated region
  $region6: #{rsu4_forward.13} parent=0 // pred_check
    _
  $region7: #{rsu4_forward.13} parent=0 // pred_check_branch
    %11 = sbr.rel (0) target = $region9
  $region8: #{rsu4_forward.13} parent=0 // pred_region
    _
  $region9: #{rsu4_forward.13} parent=0 // pred_fallthru
    _
  // Predicated region
  $region10: #{rsu4_forward.13} parent=0 // pred_check
    _
  $region11: #{rsu4_forward.13} parent=0 // pred_check_branch
    %13 = sbr.rel (0) target = $region13
  $region12: #{rsu4_forward.13} parent=0 // pred_region
    _
  $region13: #{rsu4_forward.13} parent=0 // pred_fallthru
    _
  %v14 = vld [vmem:[%s0] sm:$0xf]
  %v15 = vld [vmem:[%s0 + $0x4] sm:$0x3]
  %v16 = vunpack.c.l.bf16 %v14
  %v17 = vunpack.c.l.bf16 %v15
  %v18 = vld [vmem:[%s1] sm:$0xff]
  %v19 = vld [vmem:[%s1 + $0x8] sm:$0xff]
  %v20 = vld [vmem:[%s1 + $0x10] sm:$0xff]
  %v21 = vld [vmem:[%s1 + $0x18] sm:$0xff]
  %v22 = vld [vmem:[%s1 + $0x20] sm:$0xff]
  %v23 = vld [vmem:[%s1 + $0x28] sm:$0xff]
  %v24 = vld [vmem:[%s1 + $0x30] sm:$0xff]
  %v25 = vld [vmem:[%s1 + $0x38] sm:$0xff]
  %v26 = vld [vmem:[%s1 + $0x40] sm:$0xff]
  %v27 = vld [vmem:[%s1 + $0x48] sm:$0xff]
  %v28 = vld [vmem:[%s1 + $0x50] sm:$0xff]
  %v29 = vld [vmem:[%s1 + $0x58] sm:$0xff]
  %v30 = vld [vmem:[%s1 + $0x60] sm:$0xff]
  %v31 = vld [vmem:[%s1 + $0x68] sm:$0xf]
  %v32 = vld [vmem:[%s2] sm:$0xff]
  %v33 = vld [vmem:[%s2 + $0x8] sm:$0xf]
  %35 = vset.pattern.permute.xlu0 0
  %36 = vperm.xlu0 %35, %v32
  %v37 = vpop.permute.xlu0 %36
  %40 = vset.pattern.permute.xlu0 0
  %41 = vperm.xlu0 %40, %v33
  %v42 = vpop.permute.xlu0 %41
  %vm44 = vcmask 883712
  %v46 = vsel %vm44, %v16, 0
  %v49 = vsel %vm44, %v17, 0
  %vm51 = vcmask 1043456
  %v53 = vsel %vm51, %v31, 0
  %55 = vmatprep.subr.mxu0 0.0
  %56 = vmatpush1.msra.mxu0 %v18
  %57 = vmatprep.subr.mxu0 0.0
  %58 = vmatpush1.msra.mxu0 %v19
  %59 = vmatprep.subr.mxu0 0.0
  %60 = vmatpush1.msra.mxu0 %v20
  %61 = vmatprep.subr.mxu0 0.0
  %62 = vmatpush1.msra.mxu0 %v21
  %63 = vmatprep.subr.mxu0 0.0
  %64 = vmatpush1.msra.mxu0 %v22
  %65 = vmatprep.subr.mxu0 0.0
  %66 = vmatpush1.msra.mxu0 %v23
  %67 = vmatprep.subr.mxu0 0.0
  %68 = vmatpush1.msra.mxu0 %v24
  %69 = vmatprep.subr.mxu0 0.0
  %70 = vmatpush1.msra.mxu0 %v25
  %71 = vmatprep.subr.mxu0 0.0
  %72 = vmatpush1.msra.mxu0 %v26
  %73 = vmatprep.subr.mxu0 0.0
  %74 = vmatpush1.msra.mxu0 %v27
  %75 = vmatprep.subr.mxu0 0.0
  %76 = vmatpush1.msra.mxu0 %v28
  %77 = vmatprep.subr.mxu0 0.0
  %78 = vmatpush1.msra.mxu0 %v29
  %79 = vmatprep.subr.mxu0 0.0
  %80 = vmatpush1.msra.mxu0 %v30
  %81 = vmatprep.subr.mxu0 0.0
  %82 = vmatpush1.msra.mxu0 %v53
  %83 = vmatprep.subr.mxu0 0.0
  %84 = vmatpush1.msra.mxu0 0.0
  %85 = vmatprep.subr.mxu0 0.0
  %86 = vmatpush1.msra.mxu0 0.0
  %87 = vmatprep.subr.mxu0 0.0
  %88 = vmatpush1.msra.mxu0 0.0
  %89 = vmatprep.subr.mxu0 0.0
  %90 = vmatpush1.msra.mxu0 0.0
  %91 = vmatprep.subr.mxu0 0.0
  %92 = vmatpush1.msra.mxu0 0.0
  %93 = vmatprep.subr.mxu0 0.0
  %94 = vmatpush1.msra.mxu0 0.0
  %95 = vmatprep.subr.mxu0 0.0
  %96 = vmatpush1.msra.mxu0 0.0
  %97 = vmatprep.subr.mxu0 0.0
  %98 = vmatpush1.msra.mxu0 0.0
  %99 = vmatprep.subr.mxu0 0.0
  %100 = vmatpush1.msra.mxu0 0.0
  %101 = vmatprep.subr.mxu0 0.0
  %102 = vmatpush1.msra.mxu0 0.0
  %103 = vmatprep.subr.mxu0 0.0
  %104 = vmatpush1.msra.mxu0 0.0
  %105 = vmatprep.subr.mxu0 0.0
  %106 = vmatpush1.msra.mxu0 0.0
  %107 = vmatprep.subr.mxu0 0.0
  %108 = vmatpush1.msra.mxu0 0.0
  %109 = vmatprep.subr.mxu0 0.0
  %110 = vmatpush1.msra.mxu0 0.0
  %111 = vmatprep.subr.mxu0 0.0
  %112 = vmatpush1.msra.mxu0 0.0
  %113 = vmatprep.subr.mxu0 0.0
  %114 = vmatpush1.msra.mxu0 0.0
  %115 = vmatprep.subr.mxu0 0.0
  %116 = vmatpush1.msra.mxu0 0.0
  %117 = vmatprep.subr.mxu0 0.0
  %118 = vmatpush1.msra.mxu0 0.0
  %119 = vmatprep.mubr.f32.mxu0 0.0
  %120 = vmatmul.mubr.f32.gmra.mrb[0].mxu0 %v46
  %v121 = vpop.f32.mrb[0].mxu0
  %v122 = vadd.f32 %v37, %v121
  %v123 = vpop.f32.mrb[0].mxu0
  %124 = vmatprep.mubr.f32.mxu0 0.0
  %125 = vmatmul.mubr.f32.gmra.mrb[0].mxu0 %v49
  %v126 = vpop.f32.mrb[0].mxu0
  %v127 = vadd.f32 %v42, %v126
  %v128 = vpop.f32.mrb[0].mxu0
  %129 = vdwg.mxu0
  %v130 = vmax.f32 %v122, 0.0
  %v131 = vmax.f32 %v127, 0.0
  %vm132 = vcmask 261120
  %133 = vst.msk [vmem:[%s3] sm:$0xff] %vm132, %v130
  %vm134 = vcmask 257024
  %135 = vst.msk [vmem:[%s3 + $0x8] sm:$0xf] %vm134, %v131
  // Predicated region
  $region14: #{rsu4_forward.13} parent=0 // pred_check
    _
  $region15: #{rsu4_forward.13} parent=0 // pred_check_branch
    %137 = sbr.rel (0) target = $region17
  $region16: #{rsu4_forward.13} parent=0 // pred_region
    _
  $region17: #{rsu4_forward.13} parent=0 // pred_fallthru
    _
  // Predicated region
  $region18: #{rsu4_forward.13} parent=0 // pred_check
    _
  $region19: #{rsu4_forward.13} parent=0 // pred_check_branch
    %139 = sbr.rel (0) target = $region21
  $region20: #{rsu4_forward.13} parent=0 // pred_region
    _
  $region21: #{rsu4_forward.13} parent=0 // pred_fallthru
    _

// kernel: rsu4_forward.15
$region0: #{rsu4_forward.15}
  #allocation0 [shape = 'u32[]', space=smem, size = 0x4, offset = 0x4, fixed_abs, tag = 'smem constant byte address 0x4 - core index']
  #allocation1 [shape = 'u32[144,128]{1,0:T(1,128)}', space=vmem, size = 0x12000, scoped, tag = 'internal scratch']
  %s0 = inlined_call_operand.vmem [shape: bf16[12,216], index: 0, kind: input, shape index: {}]
  %s1 = inlined_call_operand.vmem [shape: f32[216,32], index: 1, kind: input, shape index: {}]
  %s2 = inlined_call_operand.vmem [shape: f32[12,1], index: 2, kind: input, shape index: {}]
  %s3 = inlined_call_operand.vmem [shape: f32[12,32], index: 3, kind: output, shape index: {}]
  %s4 = sld [smem:[#allocation0]]
  $region22: #{rsu4_forward.15} parent=0
    _
  %s6 = ssub.s32 1, %s4
  %s7 = scalar_select 0, %s6, %s4
  // Predicated region
  $region2: #{rsu4_forward.15} parent=0 // pred_check
    _
  $region3: #{rsu4_forward.15} parent=0 // pred_check_branch
    %9 = sbr.rel (0) target = $region5
  $region4: #{rsu4_forward.15} parent=0 // pred_region
    _
  $region5: #{rsu4_forward.15} parent=0 // pred_fallthru
    _
  // Predicated region
  $region6: #{rsu4_forward.15} parent=0 // pred_check
    _
  $region7: #{rsu4_forward.15} parent=0 // pred_check_branch
    %11 = sbr.rel (0) target = $region9
  $region8: #{rsu4_forward.15} parent=0 // pred_region
    _
  $region9: #{rsu4_forward.15} parent=0 // pred_fallthru
    _
  // Predicated region
  $region10: #{rsu4_forward.15} parent=0 // pred_check
    _
  $region11: #{rsu4_forward.15} parent=0 // pred_check_branch
    %13 = sbr.rel (0) target = $region13
  $region12: #{rsu4_forward.15} parent=0 // pred_region
    _
  $region13: #{rsu4_forward.15} parent=0 // pred_fallthru
    _
  %v14 = vld [vmem:[%s0] sm:$0xff]
  %v15 = vld [vmem:[%s0 + $0x8] sm:$0x33]
  %v16 = vunpack.c.l.bf16 %v14
  %v17 = vunpack.c.h.bf16 %v14
  %v18 = vunpack.c.l.bf16 %v15
  %v19 = vunpack.c.h.bf16 %v15
  %v20 = vld [vmem:[%s1] sm:$0xff]
  %v21 = vld [vmem:[%s1 + $0x8] sm:$0xff]
  %v22 = vld [vmem:[%s1 + $0x10] sm:$0xff]
  %v23 = vld [vmem:[%s1 + $0x18] sm:$0xff]
  %v24 = vld [vmem:[%s1 + $0x20] sm:$0xff]
  %v25 = vld [vmem:[%s1 + $0x28] sm:$0xff]
  %v26 = vld [vmem:[%s1 + $0x30] sm:$0xff]
  %v27 = vld [vmem:[%s1 + $0x38] sm:$0xff]
  %v28 = vld [vmem:[%s1 + $0x40] sm:$0xff]
  %v29 = vld [vmem:[%s1 + $0x48] sm:$0xff]
  %v30 = vld [vmem:[%s1 + $0x50] sm:$0xff]
  %v31 = vld [vmem:[%s1 + $0x58] sm:$0xff]
  %v32 = vld [vmem:[%s1 + $0x60] sm:$0xff]
  %v33 = vld [vmem:[%s1 + $0x68] sm:$0xff]
  %v34 = vld [vmem:[%s1 + $0x70] sm:$0xff]
  %v35 = vld [vmem:[%s1 + $0x78] sm:$0xff]
  %v36 = vld [vmem:[%s1 + $0x80] sm:$0xff]
  %v37 = vld [vmem:[%s1 + $0x88] sm:$0xff]
  %v38 = vld [vmem:[%s1 + $0x90] sm:$0xff]
  %v39 = vld [vmem:[%s1 + $0x98] sm:$0xff]
  %v40 = vld [vmem:[%s1 + $0xa0] sm:$0xff]
  %v41 = vld [vmem:[%s1 + $0xa8] sm:$0xff]
  %v42 = vld [vmem:[%s1 + $0xb0] sm:$0xff]
  %v43 = vld [vmem:[%s1 + $0xb8] sm:$0xff]
  %v44 = vld [vmem:[%s1 + $0xc0] sm:$0xff]
  %v45 = vld [vmem:[%s1 + $0xc8] sm:$0xff]
  %v46 = vld [vmem:[%s1 + $0xd0] sm:$0xff]
  %v47 = vld [vmem:[%s2] sm:$0xff]
  %v48 = vld [vmem:[%s2 + $0x8] sm:$0xf]
  %50 = vset.pattern.permute.xlu0 0
  %51 = vperm.xlu0 %50, %v47
  %v52 = vpop.permute.xlu0 %51
  %55 = vset.pattern.permute.xlu0 0
  %56 = vperm.xlu0 %55, %v48
  %v57 = vpop.permute.xlu0 %56
  %vm59 = vcmask 719872
  %v61 = vsel %vm59, %v17, 0
  %v64 = vsel %vm59, %v19, 0
  %66 = vmatprep.subr.mxu0 0.0
  %67 = vmatpush1.msra.mxu0 %v20
  %68 = vmatprep.subr.mxu0 0.0
  %69 = vmatpush1.msra.mxu0 %v21
  %70 = vmatprep.subr.mxu0 0.0
  %71 = vmatpush1.msra.mxu0 %v22
  %72 = vmatprep.subr.mxu0 0.0
  %73 = vmatpush1.msra.mxu0 %v23
  %74 = vmatprep.subr.mxu0 0.0
  %75 = vmatpush1.msra.mxu0 %v24
  %76 = vmatprep.subr.mxu0 0.0
  %77 = vmatpush1.msra.mxu0 %v25
  %78 = vmatprep.subr.mxu0 0.0
  %79 = vmatpush1.msra.mxu0 %v26
  %80 = vmatprep.subr.mxu0 0.0
  %81 = vmatpush1.msra.mxu0 %v27
  %82 = vmatprep.subr.mxu0 0.0
  %83 = vmatpush1.msra.mxu0 %v28
  %84 = vmatprep.subr.mxu0 0.0
  %85 = vmatpush1.msra.mxu0 %v29
  %86 = vmatprep.subr.mxu0 0.0
  %87 = vmatpush1.msra.mxu0 %v30
  %88 = vmatprep.subr.mxu0 0.0
  %89 = vmatpush1.msra.mxu0 %v31
  %90 = vmatprep.subr.mxu0 0.0
  %91 = vmatpush1.msra.mxu0 %v32
  %92 = vmatprep.subr.mxu0 0.0
  %93 = vmatpush1.msra.mxu0 %v33
  %94 = vmatprep.subr.mxu0 0.0
  %95 = vmatpush1.msra.mxu0 %v34
  %96 = vmatprep.subr.mxu0 0.0
  %97 = vmatpush1.msra.mxu0 %v35
  %98 = vmatprep.subr.mxu0 0.0
  %99 = vmatpush1.msra.mxu0 %v36
  %100 = vmatprep.subr.mxu0 0.0
  %101 = vmatpush1.msra.mxu0 %v37
  %102 = vmatprep.subr.mxu0 0.0
  %103 = vmatpush1.msra.mxu0 %v38
  %104 = vmatprep.subr.mxu0 0.0
  %105 = vmatpush1.msra.mxu0 %v39
  %106 = vmatprep.subr.mxu0 0.0
  %107 = vmatpush1.msra.mxu0 %v40
  %108 = vmatprep.subr.mxu0 0.0
  %109 = vmatpush1.msra.mxu0 %v41
  %110 = vmatprep.subr.mxu0 0.0
  %111 = vmatpush1.msra.mxu0 %v42
  %112 = vmatprep.subr.mxu0 0.0
  %113 = vmatpush1.msra.mxu0 %v43
  %114 = vmatprep.subr.mxu0 0.0
  %115 = vmatpush1.msra.mxu0 %v44
  %116 = vmatprep.subr.mxu0 0.0
  %117 = vmatpush1.msra.mxu0 %v45
  %118 = vmatprep.subr.mxu0 0.0
  %119 = vmatpush1.msra.mxu0 %v46
  %120 = vmatprep.subr.mxu0 0.0
  %121 = vmatpush1.msra.mxu0 0.0
  %122 = vmatprep.subr.mxu0 0.0
  %123 = vmatpush1.msra.mxu0 0.0
  %124 = vmatprep.subr.mxu0 0.0
  %125 = vmatpush1.msra.mxu0 0.0
  %126 = vmatprep.subr.mxu0 0.0
  %127 = vmatpush1.msra.mxu0 0.0
  %128 = vmatprep.subr.mxu0 0.0
  %129 = vmatpush1.msra.mxu0 0.0
  %130 = vmatprep.mubr.f32.mxu0 %v61
  %131 = vmatmul.mubr.f32.gmra.mrb[0].mxu0 %v16
  %v132 = vpop.f32.mrb[0].mxu0
  %v133 = vadd.f32 %v52, %v132
  %v134 = vpop.f32.mrb[0].mxu0
  %135 = vmatprep.mubr.f32.mxu0 %v64
  %136 = vmatmul.mubr.f32.gmra.mrb[0].mxu0 %v18
  %v137 = vpop.f32.mrb[0].mxu0
  %v138 = vadd.f32 %v57, %v137
  %v139 = vpop.f32.mrb[0].mxu0
  %140 = vdwg.mxu0
  %v141 = vmax.f32 %v133, 0.0
  %v142 = vmax.f32 %v138, 0.0
  %vm143 = vcmask 261120
  %144 = vst.msk [vmem:[%s3] sm:$0xff] %vm143, %v141
  %vm145 = vcmask 257024
  %146 = vst.msk [vmem:[%s3 + $0x8] sm:$0xf] %vm145, %v142
  // Predicated region
  $region14: #{rsu4_forward.15} parent=0 // pred_check
    _
  $region15: #{rsu4_forward.15} parent=0 // pred_check_branch
    %148 = sbr.rel (0) target = $region17
  $region16: #{rsu4_forward.15} parent=0 // pred_region
    _
  $region17: #{rsu4_forward.15} parent=0 // pred_fallthru
    _
  // Predicated region
  $region18: #{rsu4_forward.15} parent=0 // pred_check
    _
  $region19: #{rsu4_forward.15} parent=0 // pred_check_branch
    %150 = sbr.rel (0) target = $region21
  $region20: #{rsu4_forward.15} parent=0 // pred_region
    _
  $region21: #{rsu4_forward.15} parent=0 // pred_fallthru
    _

// kernel: rsu4_forward.16
$region0: #{rsu4_forward.16}
  #allocation0 [shape = 'u32[]', space=smem, size = 0x4, offset = 0x4, fixed_abs, tag = 'smem constant byte address 0x4 - core index']
  #allocation1 [shape = 'u32[144,128]{1,0:T(1,128)}', space=vmem, size = 0x12000, scoped, tag = 'internal scratch']
  %s0 = inlined_call_operand.vmem [shape: bf16[48,12], index: 0, kind: input, shape index: {}]
  %s1 = inlined_call_operand.vmem [shape: f32[12,32], index: 1, kind: input, shape index: {}]
  %s2 = inlined_call_operand.vmem [shape: f32[48,1], index: 2, kind: input, shape index: {}]
  %s3 = inlined_call_operand.vmem [shape: f32[48,32], index: 3, kind: output, shape index: {}]
  %s4 = sld [smem:[#allocation0]]
  $region22: #{rsu4_forward.16} parent=0
    _
  %s6 = ssub.s32 1, %s4
  %s7 = scalar_select 0, %s6, %s4
  // Predicated region
  $region2: #{rsu4_forward.16} parent=0 // pred_check
    _
  $region3: #{rsu4_forward.16} parent=0 // pred_check_branch
    %9 = sbr.rel (0) target = $region5
  $region4: #{rsu4_forward.16} parent=0 // pred_region
    _
  $region5: #{rsu4_forward.16} parent=0 // pred_fallthru
    _
  // Predicated region
  $region6: #{rsu4_forward.16} parent=0 // pred_check
    _
  $region7: #{rsu4_forward.16} parent=0 // pred_check_branch
    %11 = sbr.rel (0) target = $region9
  $region8: #{rsu4_forward.16} parent=0 // pred_region
    _
  $region9: #{rsu4_forward.16} parent=0 // pred_fallthru
    _
  // Predicated region
  $region10: #{rsu4_forward.16} parent=0 // pred_check
    _
  $region11: #{rsu4_forward.16} parent=0 // pred_check_branch
    %13 = sbr.rel (0) target = $region13
  $region12: #{rsu4_forward.16} parent=0 // pred_region
    _
  $region13: #{rsu4_forward.16} parent=0 // pred_fallthru
    _
  %v14 = vld [vmem:[%s0] sm:$0xf]
  %v15 = vld [vmem:[%s0 + $0x4] sm:$0xf]
  %v16 = vld [vmem:[%s0 + $0x8] sm:$0xf]
  %v17 = vld [vmem:[%s0 + $0xc] sm:$0xf]
  %v18 = vld [vmem:[%s0 + $0x10] sm:$0xf]
  %v19 = vld [vmem:[%s0 + $0x14] sm:$0xf]
  %v20 = vunpack.c.l.bf16 %v14
  %v21 = vunpack.c.l.bf16 %v15
  %v22 = vunpack.c.l.bf16 %v16
  %v23 = vunpack.c.l.bf16 %v17
  %v24 = vunpack.c.l.bf16 %v18
  %v25 = vunpack.c.l.bf16 %v19
  %v26 = vld [vmem:[%s1] sm:$0xff]
  %v27 = vld [vmem:[%s1 + $0x8] sm:$0xf]
  %v28 = vld [vmem:[%s2] sm:$0xff]
  %v29 = vld [vmem:[%s2 + $0x8] sm:$0xff]
  %v30 = vld [vmem:[%s2 + $0x10] sm:$0xff]
  %v31 = vld [vmem:[%s2 + $0x18] sm:$0xff]
  %v32 = vld [vmem:[%s2 + $0x20] sm:$0xff]
  %v33 = vld [vmem:[%s2 + $0x28] sm:$0xff]
  %35 = vset.pattern.permute.xlu0 0
  %36 = vperm.xlu0 %35, %v28
  %v37 = vpop.permute.xlu0 %36
  %40 = vset.pattern.permute.xlu0 0
  %41 = vperm.xlu0 %40, %v29
  %v42 = vpop.permute.xlu0 %41
  %45 = vset.pattern.permute.xlu0 0
  %46 = vperm.xlu0 %45, %v30
  %v47 = vpop.permute.xlu0 %46
  %50 = vset.pattern.permute.xlu0 0
  %51 = vperm.xlu0 %50, %v31
  %v52 = vpop.permute.xlu0 %51
  %55 = vset.pattern.permute.xlu0 0
  %56 = vperm.xlu0 %55, %v32
  %v57 = vpop.permute.xlu0 %56
  %60 = vset.pattern.permute.xlu0 0
  %61 = vperm.xlu0 %60, %v33
  %v62 = vpop.permute.xlu0 %61
  %vm64 = vcmask 97280
  %v66 = vsel %vm64, %v20, 0
  %v69 = vsel %vm64, %v21, 0
  %v72 = vsel %vm64, %v22, 0
  %v75 = vsel %vm64, %v23, 0
  %v78 = vsel %vm64, %v24, 0
  %v81 = vsel %vm64, %v25, 0
  %vm83 = vcmask 1043456
  %v85 = vsel %vm83, %v27, 0
  %87 = vmatprep.subr.mxu0 0.0
  %88 = vmatpush1.msra.mxu0 %v26
  %89 = vmatprep.subr.mxu0 0.0
  %90 = vmatpush1.msra.mxu0 %v85
  %91 = vmatprep.subr.mxu0 0.0
  %92 = vmatpush1.msra.mxu0 0.0
  %93 = vmatprep.subr.mxu0 0.0
  %94 = vmatpush1.msra.mxu0 0.0
  %95 = vmatprep.subr.mxu0 0.0
  %96 = vmatpush1.msra.mxu0 0.0
  %97 = vmatprep.subr.mxu0 0.0
  %98 = vmatpush1.msra.mxu0 0.0
  %99 = vmatprep.subr.mxu0 0.0
  %100 = vmatpush1.msra.mxu0 0.0
  %101 = vmatprep.subr.mxu0 0.0
  %102 = vmatpush1.msra.mxu0 0.0
  %103 = vmatprep.subr.mxu0 0.0
  %104 = vmatpush1.msra.mxu0 0.0
  %105 = vmatprep.subr.mxu0 0.0
  %106 = vmatpush1.msra.mxu0 0.0
  %107 = vmatprep.subr.mxu0 0.0
  %108 = vmatpush1.msra.mxu0 0.0
  %109 = vmatprep.subr.mxu0 0.0
  %110 = vmatpush1.msra.mxu0 0.0
  %111 = vmatprep.subr.mxu0 0.0
  %112 = vmatpush1.msra.mxu0 0.0
  %113 = vmatprep.subr.mxu0 0.0
  %114 = vmatpush1.msra.mxu0 0.0
  %115 = vmatprep.subr.mxu0 0.0
  %116 = vmatpush1.msra.mxu0 0.0
  %117 = vmatprep.subr.mxu0 0.0
  %118 = vmatpush1.msra.mxu0 0.0
  %119 = vmatprep.subr.mxu0 0.0
  %120 = vmatpush1.msra.mxu0 0.0
  %121 = vmatprep.subr.mxu0 0.0
  %122 = vmatpush1.msra.mxu0 0.0
  %123 = vmatprep.subr.mxu0 0.0
  %124 = vmatpush1.msra.mxu0 0.0
  %125 = vmatprep.subr.mxu0 0.0
  %126 = vmatpush1.msra.mxu0 0.0
  %127 = vmatprep.subr.mxu0 0.0
  %128 = vmatpush1.msra.mxu0 0.0
  %129 = vmatprep.subr.mxu0 0.0
  %130 = vmatpush1.msra.mxu0 0.0
  %131 = vmatprep.subr.mxu0 0.0
  %132 = vmatpush1.msra.mxu0 0.0
  %133 = vmatprep.subr.mxu0 0.0
  %134 = vmatpush1.msra.mxu0 0.0
  %135 = vmatprep.subr.mxu0 0.0
  %136 = vmatpush1.msra.mxu0 0.0
  %137 = vmatprep.subr.mxu0 0.0
  %138 = vmatpush1.msra.mxu0 0.0
  %139 = vmatprep.subr.mxu0 0.0
  %140 = vmatpush1.msra.mxu0 0.0
  %141 = vmatprep.subr.mxu0 0.0
  %142 = vmatpush1.msra.mxu0 0.0
  %143 = vmatprep.subr.mxu0 0.0
  %144 = vmatpush1.msra.mxu0 0.0
  %145 = vmatprep.subr.mxu0 0.0
  %146 = vmatpush1.msra.mxu0 0.0
  %147 = vmatprep.subr.mxu0 0.0
  %148 = vmatpush1.msra.mxu0 0.0
  %149 = vmatprep.subr.mxu0 0.0
  %150 = vmatpush1.msra.mxu0 0.0
  %151 = vmatprep.mubr.f32.mxu0 0.0
  %152 = vmatmul.mubr.f32.gmra.mrb[0].mxu0 %v66
  %v153 = vpop.f32.mrb[0].mxu0
  %v154 = vadd.f32 %v37, %v153
  %v155 = vpop.f32.mrb[0].mxu0
  %156 = vmatprep.mubr.f32.mxu0 0.0
  %157 = vmatmul.mubr.f32.gmra.mrb[0].mxu0 %v69
  %v158 = vpop.f32.mrb[0].mxu0
  %v159 = vadd.f32 %v42, %v158
  %v160 = vpop.f32.mrb[0].mxu0
  %161 = vmatprep.mubr.f32.mxu0 0.0
  %162 = vmatmul.mubr.f32.gmra.mrb[0].mxu0 %v72
  %v163 = vpop.f32.mrb[0].mxu0
  %v164 = vadd.f32 %v47, %v163
  %v165 = vpop.f32.mrb[0].mxu0
  %166 = vmatprep.mubr.f32.mxu0 0.0
  %167 = vmatmul.mubr.f32.gmra.mrb[0].mxu0 %v75
  %v168 = vpop.f32.mrb[0].mxu0
  %v169 = vadd.f32 %v52, %v168
  %v170 = vpop.f32.mrb[0].mxu0
  %171 = vmatprep.mubr.f32.mxu0 0.0
  %172 = vmatmul.mubr.f32.gmra.mrb[0].mxu0 %v78
  %v173 = vpop.f32.mrb[0].mxu0
  %v174 = vadd.f32 %v57, %v173
  %v175 = vpop.f32.mrb[0].mxu0
  %176 = vmatprep.mubr.f32.mxu0 0.0
  %177 = vmatmul.mubr.f32.gmra.mrb[0].mxu0 %v81
  %v178 = vpop.f32.mrb[0].mxu0
  %v179 = vadd.f32 %v62, %v178
  %v180 = vpop.f32.mrb[0].mxu0
  %181 = vdwg.mxu0
  %vm182 = vcmask 261120
  %183 = vst.msk [vmem:[%s3] sm:$0xff] %vm182, %v154
  %184 = vst.msk [vmem:[%s3 + $0x8] sm:$0xff] %vm182, %v159
  %185 = vst.msk [vmem:[%s3 + $0x10] sm:$0xff] %vm182, %v164
  %186 = vst.msk [vmem:[%s3 + $0x18] sm:$0xff] %vm182, %v169
  %187 = vst.msk [vmem:[%s3 + $0x20] sm:$0xff] %vm182, %v174
  %188 = vst.msk [vmem:[%s3 + $0x28] sm:$0xff] %vm182, %v179
  // Predicated region
  $region14: #{rsu4_forward.16} parent=0 // pred_check
    _
  $region15: #{rsu4_forward.16} parent=0 // pred_check_branch
    %190 = sbr.rel (0) target = $region17
  $region16: #{rsu4_forward.16} parent=0 // pred_region
    _
  $region17: #{rsu4_forward.16} parent=0 // pred_fallthru
    _
  // Predicated region
  $region18: #{rsu4_forward.16} parent=0 // pred_check
    _
  $region19: #{rsu4_forward.16} parent=0 // pred_check_branch
    %192 = sbr.rel (0) target = $region21
  $region20: #{rsu4_forward.16} parent=0 // pred_region
    _
  $region21: #{rsu4_forward.16} parent=0 // pred_fallthru
    _

// kernel: rsu4_forward.17
$region0: #{rsu4_forward.17}
  #allocation0 [shape = 'u32[]', space=smem, size = 0x4, offset = 0x4, fixed_abs, tag = 'smem constant byte address 0x4 - core index']
  #allocation1 [shape = 'u32[144,128]{1,0:T(1,128)}', space=vmem, size = 0x12000, scoped, tag = 'internal scratch']
  %s0 = inlined_call_operand.vmem [shape: bf16[12,216], index: 0, kind: input, shape index: {}]
  %s1 = inlined_call_operand.vmem [shape: f32[216,128], index: 1, kind: input, shape index: {}]
  %s2 = inlined_call_operand.vmem [shape: f32[12,1], index: 2, kind: input, shape index: {}]
  %s3 = inlined_call_operand.vmem [shape: f32[12,128], index: 3, kind: output, shape index: {}]
  %s4 = sld [smem:[#allocation0]]
  $region22: #{rsu4_forward.17} parent=0
    _
  %s6 = ssub.s32 1, %s4
  %s7 = scalar_select 0, %s6, %s4
  // Predicated region
  $region2: #{rsu4_forward.17} parent=0 // pred_check
    _
  $region3: #{rsu4_forward.17} parent=0 // pred_check_branch
    %9 = sbr.rel (0) target = $region5
  $region4: #{rsu4_forward.17} parent=0 // pred_region
    _
  $region5: #{rsu4_forward.17} parent=0 // pred_fallthru
    _
  // Predicated region
  $region6: #{rsu4_forward.17} parent=0 // pred_check
    _
  $region7: #{rsu4_forward.17} parent=0 // pred_check_branch
    %11 = sbr.rel (0) target = $region9
  $region8: #{rsu4_forward.17} parent=0 // pred_region
    _
  $region9: #{rsu4_forward.17} parent=0 // pred_fallthru
    _
  // Predicated region
  $region10: #{rsu4_forward.17} parent=0 // pred_check
    _
  $region11: #{rsu4_forward.17} parent=0 // pred_check_branch
    %13 = sbr.rel (0) target = $region13
  $region12: #{rsu4_forward.17} parent=0 // pred_region
    _
  $region13: #{rsu4_forward.17} parent=0 // pred_fallthru
    _
  %v14 = vld [vmem:[%s0] sm:$0xff]
  %v15 = vld [vmem:[%s0 + $0x8] sm:$0x33]
  %v16 = vunpack.c.l.bf16 %v14
  %v17 = vunpack.c.h.bf16 %v14
  %v18 = vunpack.c.l.bf16 %v15
  %v19 = vunpack.c.h.bf16 %v15
  %v20 = vld [vmem:[%s1] sm:$0xff]
  %v21 = vld [vmem:[%s1 + $0x8] sm:$0xff]
  %v22 = vld [vmem:[%s1 + $0x10] sm:$0xff]
  %v23 = vld [vmem:[%s1 + $0x18] sm:$0xff]
  %v24 = vld [vmem:[%s1 + $0x20] sm:$0xff]
  %v25 = vld [vmem:[%s1 + $0x28] sm:$0xff]
  %v26 = vld [vmem:[%s1 + $0x30] sm:$0xff]
  %v27 = vld [vmem:[%s1 + $0x38] sm:$0xff]
  %v28 = vld [vmem:[%s1 + $0x40] sm:$0xff]
  %v29 = vld [vmem:[%s1 + $0x48] sm:$0xff]
  %v30 = vld [vmem:[%s1 + $0x50] sm:$0xff]
  %v31 = vld [vmem:[%s1 + $0x58] sm:$0xff]
  %v32 = vld [vmem:[%s1 + $0x60] sm:$0xff]
  %v33 = vld [vmem:[%s1 + $0x68] sm:$0xff]
  %v34 = vld [vmem:[%s1 + $0x70] sm:$0xff]
  %v35 = vld [vmem:[%s1 + $0x78] sm:$0xff]
  %v36 = vld [vmem:[%s1 + $0x80] sm:$0xff]
  %v37 = vld [vmem:[%s1 + $0x88] sm:$0xff]
  %v38 = vld [vmem:[%s1 + $0x90] sm:$0xff]
  %v39 = vld [vmem:[%s1 + $0x98] sm:$0xff]
  %v40 = vld [vmem:[%s1 + $0xa0] sm:$0xff]
  %v41 = vld [vmem:[%s1 + $0xa8] sm:$0xff]
  %v42 = vld [vmem:[%s1 + $0xb0] sm:$0xff]
  %v43 = vld [vmem:[%s1 + $0xb8] sm:$0xff]
  %v44 = vld [vmem:[%s1 + $0xc0] sm:$0xff]
  %v45 = vld [vmem:[%s1 + $0xc8] sm:$0xff]
  %v46 = vld [vmem:[%s1 + $0xd0] sm:$0xff]
  %v47 = vld [vmem:[%s2] sm:$0xff]
  %v48 = vld [vmem:[%s2 + $0x8] sm:$0xf]
  %50 = vset.pattern.permute.xlu0 0
  %51 = vperm.xlu0 %50, %v47
  %v52 = vpop.permute.xlu0 %51
  %55 = vset.pattern.permute.xlu0 0
  %56 = vperm.xlu0 %55, %v48
  %v57 = vpop.permute.xlu0 %56
  %vm59 = vcmask 719872
  %v61 = vsel %vm59, %v17, 0
  %v64 = vsel %vm59, %v19, 0
  %66 = vmatprep.subr.mxu0 0.0
  %67 = vmatpush1.msra.mxu0 %v20
  %68 = vmatprep.subr.mxu0 0.0
  %69 = vmatpush1.msra.mxu0 %v21
  %70 = vmatprep.subr.mxu0 0.0
  %71 = vmatpush1.msra.mxu0 %v22
  %72 = vmatprep.subr.mxu0 0.0
  %73 = vmatpush1.msra.mxu0 %v23
  %74 = vmatprep.subr.mxu0 0.0
  %75 = vmatpush1.msra.mxu0 %v24
  %76 = vmatprep.subr.mxu0 0.0
  %77 = vmatpush1.msra.mxu0 %v25
  %78 = vmatprep.subr.mxu0 0.0
  %79 = vmatpush1.msra.mxu0 %v26
  %80 = vmatprep.subr.mxu0 0.0
  %81 = vmatpush1.msra.mxu0 %v27
  %82 = vmatprep.subr.mxu0 0.0
  %83 = vmatpush1.msra.mxu0 %v28
  %84 = vmatprep.subr.mxu0 0.0
  %85 = vmatpush1.msra.mxu0 %v29
  %86 = vmatprep.subr.mxu0 0.0
  %87 = vmatpush1.msra.mxu0 %v30
  %88 = vmatprep.subr.mxu0 0.0
  %89 = vmatpush1.msra.mxu0 %v31
  %90 = vmatprep.subr.mxu0 0.0
  %91 = vmatpush1.msra.mxu0 %v32
  %92 = vmatprep.subr.mxu0 0.0
  %93 = vmatpush1.msra.mxu0 %v33
  %94 = vmatprep.subr.mxu0 0.0
  %95 = vmatpush1.msra.mxu0 %v34
  %96 = vmatprep.subr.mxu0 0.0
  %97 = vmatpush1.msra.mxu0 %v35
  %98 = vmatprep.subr.mxu0 0.0
  %99 = vmatpush1.msra.mxu0 %v36
  %100 = vmatprep.subr.mxu0 0.0
  %101 = vmatpush1.msra.mxu0 %v37
  %102 = vmatprep.subr.mxu0 0.0
  %103 = vmatpush1.msra.mxu0 %v38
  %104 = vmatprep.subr.mxu0 0.0
  %105 = vmatpush1.msra.mxu0 %v39
  %106 = vmatprep.subr.mxu0 0.0
  %107 = vmatpush1.msra.mxu0 %v40
  %108 = vmatprep.subr.mxu0 0.0
  %109 = vmatpush1.msra.mxu0 %v41
  %110 = vmatprep.subr.mxu0 0.0
  %111 = vmatpush1.msra.mxu0 %v42
  %112 = vmatprep.subr.mxu0 0.0
  %113 = vmatpush1.msra.mxu0 %v43
  %114 = vmatprep.subr.mxu0 0.0
  %115 = vmatpush1.msra.mxu0 %v44
  %116 = vmatprep.subr.mxu0 0.0
  %117 = vmatpush1.msra.mxu0 %v45
  %118 = vmatprep.subr.mxu0 0.0
  %119 = vmatpush1.msra.mxu0 %v46
  %120 = vmatprep.subr.mxu0 0.0
  %121 = vmatpush1.msra.mxu0 0.0
  %122 = vmatprep.subr.mxu0 0.0
  %123 = vmatpush1.msra.mxu0 0.0
  %124 = vmatprep.subr.mxu0 0.0
  %125 = vmatpush1.msra.mxu0 0.0
  %126 = vmatprep.subr.mxu0 0.0
  %127 = vmatpush1.msra.mxu0 0.0
  %128 = vmatprep.subr.mxu0 0.0
  %129 = vmatpush1.msra.mxu0 0.0
  %130 = vmatprep.mubr.f32.mxu0 %v61
  %131 = vmatmul.mubr.f32.gmra.mrb[0].mxu0 %v16
  %v132 = vpop.f32.mrb[0].mxu0
  %v133 = vadd.f32 %v52, %v132
  %v134 = vpop.f32.mrb[0].mxu0
  %135 = vmatprep.mubr.f32.mxu0 %v64
  %136 = vmatmul.mubr.f32.gmra.mrb[0].mxu0 %v18
  %v137 = vpop.f32.mrb[0].mxu0
  %v138 = vadd.f32 %v57, %v137
  %v139 = vpop.f32.mrb[0].mxu0
  %140 = vdwg.mxu0
  %v141 = vmax.f32 %v133, 0.0
  %v142 = vmax.f32 %v138, 0.0
  %143 = vst [vmem:[%s3] sm:$0xff] %v141
  %144 = vst [vmem:[%s3 + $0x8] sm:$0xf] %v142
  // Predicated region
  $region14: #{rsu4_forward.17} parent=0 // pred_check
    _
  $region15: #{rsu4_forward.17} parent=0 // pred_check_branch
    %146 = sbr.rel (0) target = $region17
  $region16: #{rsu4_forward.17} parent=0 // pred_region
    _
  $region17: #{rsu4_forward.17} parent=0 // pred_fallthru
    _
  // Predicated region
  $region18: #{rsu4_forward.17} parent=0 // pred_check
    _
  $region19: #{rsu4_forward.17} parent=0 // pred_check_branch
    %148 = sbr.rel (0) target = $region21
  $region20: #{rsu4_forward.17} parent=0 // pred_region
    _
  $region21: #{rsu4_forward.17} parent=0 // pred_fallthru
    _

// kernel: rsu4_forward.18
$region0: #{rsu4_forward.18}
  #allocation0 [shape = 'u32[]', space=smem, size = 0x4, offset = 0x4, fixed_abs, tag = 'smem constant byte address 0x4 - core index']
  #allocation1 [shape = 'u32[144,128]{1,0:T(1,128)}', space=vmem, size = 0x12000, scoped, tag = 'internal scratch']
  %s0 = inlined_call_operand.vmem [shape: bf16[48,12], index: 0, kind: input, shape index: {}]
  %s1 = inlined_call_operand.vmem [shape: f32[12,128], index: 1, kind: input, shape index: {}]
  %s2 = inlined_call_operand.vmem [shape: f32[48,1], index: 2, kind: input, shape index: {}]
  %s3 = inlined_call_operand.vmem [shape: f32[48,128], index: 3, kind: output, shape index: {}]
  %s4 = sld [smem:[#allocation0]]
  $region22: #{rsu4_forward.18} parent=0
    _
  %s6 = ssub.s32 1, %s4
  %s7 = scalar_select 0, %s6, %s4
  // Predicated region
  $region2: #{rsu4_forward.18} parent=0 // pred_check
    _
  $region3: #{rsu4_forward.18} parent=0 // pred_check_branch
    %9 = sbr.rel (0) target = $region5
  $region4: #{rsu4_forward.18} parent=0 // pred_region
    _
  $region5: #{rsu4_forward.18} parent=0 // pred_fallthru
    _
  // Predicated region
  $region6: #{rsu4_forward.18} parent=0 // pred_check
    _
  $region7: #{rsu4_forward.18} parent=0 // pred_check_branch
    %11 = sbr.rel (0) target = $region9
  $region8: #{rsu4_forward.18} parent=0 // pred_region
    _
  $region9: #{rsu4_forward.18} parent=0 // pred_fallthru
    _
  // Predicated region
  $region10: #{rsu4_forward.18} parent=0 // pred_check
    _
  $region11: #{rsu4_forward.18} parent=0 // pred_check_branch
    %13 = sbr.rel (0) target = $region13
  $region12: #{rsu4_forward.18} parent=0 // pred_region
    _
  $region13: #{rsu4_forward.18} parent=0 // pred_fallthru
    _
  %v14 = vld [vmem:[%s0] sm:$0xf]
  %v15 = vld [vmem:[%s0 + $0x4] sm:$0xf]
  %v16 = vld [vmem:[%s0 + $0x8] sm:$0xf]
  %v17 = vld [vmem:[%s0 + $0xc] sm:$0xf]
  %v18 = vld [vmem:[%s0 + $0x10] sm:$0xf]
  %v19 = vld [vmem:[%s0 + $0x14] sm:$0xf]
  %v20 = vunpack.c.l.bf16 %v14
  %v21 = vunpack.c.l.bf16 %v15
  %v22 = vunpack.c.l.bf16 %v16
  %v23 = vunpack.c.l.bf16 %v17
  %v24 = vunpack.c.l.bf16 %v18
  %v25 = vunpack.c.l.bf16 %v19
  %v26 = vld [vmem:[%s1] sm:$0xff]
  %v27 = vld [vmem:[%s1 + $0x8] sm:$0xf]
  %v28 = vld [vmem:[%s2] sm:$0xff]
  %v29 = vld [vmem:[%s2 + $0x8] sm:$0xff]
  %v30 = vld [vmem:[%s2 + $0x10] sm:$0xff]
  %v31 = vld [vmem:[%s2 + $0x18] sm:$0xff]
  %v32 = vld [vmem:[%s2 + $0x20] sm:$0xff]
  %v33 = vld [vmem:[%s2 + $0x28] sm:$0xff]
  %35 = vset.pattern.permute.xlu0 0
  %36 = vperm.xlu0 %35, %v28
  %v37 = vpop.permute.xlu0 %36
  %40 = vset.pattern.permute.xlu0 0
  %41 = vperm.xlu0 %40, %v29
  %v42 = vpop.permute.xlu0 %41
  %45 = vset.pattern.permute.xlu0 0
  %46 = vperm.xlu0 %45, %v30
  %v47 = vpop.permute.xlu0 %46
  %50 = vset.pattern.permute.xlu0 0
  %51 = vperm.xlu0 %50, %v31
  %v52 = vpop.permute.xlu0 %51
  %55 = vset.pattern.permute.xlu0 0
  %56 = vperm.xlu0 %55, %v32
  %v57 = vpop.permute.xlu0 %56
  %60 = vset.pattern.permute.xlu0 0
  %61 = vperm.xlu0 %60, %v33
  %v62 = vpop.permute.xlu0 %61
  %vm64 = vcmask 97280
  %v66 = vsel %vm64, %v20, 0
  %v69 = vsel %vm64, %v21, 0
  %v72 = vsel %vm64, %v22, 0
  %v75 = vsel %vm64, %v23, 0
  %v78 = vsel %vm64, %v24, 0
  %v81 = vsel %vm64, %v25, 0
  %vm83 = vcmask 1043456
  %v85 = vsel %vm83, %v27, 0
  %87 = vmatprep.subr.mxu0 0.0
  %88 = vmatpush1.msra.mxu0 %v26
  %89 = vmatprep.subr.mxu0 0.0
  %90 = vmatpush1.msra.mxu0 %v85
  %91 = vmatprep.subr.mxu0 0.0
  %92 = vmatpush1.msra.mxu0 0.0
  %93 = vmatprep.subr.mxu0 0.0
  %94 = vmatpush1.msra.mxu0 0.0
  %95 = vmatprep.subr.mxu0 0.0
  %96 = vmatpush1.msra.mxu0 0.0
  %97 = vmatprep.subr.mxu0 0.0
  %98 = vmatpush1.msra.mxu0 0.0
  %99 = vmatprep.subr.mxu0 0.0
  %100 = vmatpush1.msra.mxu0 0.0
  %101 = vmatprep.subr.mxu0 0.0
  %102 = vmatpush1.msra.mxu0 0.0
  %103 = vmatprep.subr.mxu0 0.0
  %104 = vmatpush1.msra.mxu0 0.0
  %105 = vmatprep.subr.mxu0 0.0
  %106 = vmatpush1.msra.mxu0 0.0
  %107 = vmatprep.subr.mxu0 0.0
  %108 = vmatpush1.msra.mxu0 0.0
  %109 = vmatprep.subr.mxu0 0.0
  %110 = vmatpush1.msra.mxu0 0.0
  %111 = vmatprep.subr.mxu0 0.0
  %112 = vmatpush1.msra.mxu0 0.0
  %113 = vmatprep.subr.mxu0 0.0
  %114 = vmatpush1.msra.mxu0 0.0
  %115 = vmatprep.subr.mxu0 0.0
  %116 = vmatpush1.msra.mxu0 0.0
  %117 = vmatprep.subr.mxu0 0.0
  %118 = vmatpush1.msra.mxu0 0.0
  %119 = vmatprep.subr.mxu0 0.0
  %120 = vmatpush1.msra.mxu0 0.0
  %121 = vmatprep.subr.mxu0 0.0
  %122 = vmatpush1.msra.mxu0 0.0
  %123 = vmatprep.subr.mxu0 0.0
  %124 = vmatpush1.msra.mxu0 0.0
  %125 = vmatprep.subr.mxu0 0.0
  %126 = vmatpush1.msra.mxu0 0.0
  %127 = vmatprep.subr.mxu0 0.0
  %128 = vmatpush1.msra.mxu0 0.0
  %129 = vmatprep.subr.mxu0 0.0
  %130 = vmatpush1.msra.mxu0 0.0
  %131 = vmatprep.subr.mxu0 0.0
  %132 = vmatpush1.msra.mxu0 0.0
  %133 = vmatprep.subr.mxu0 0.0
  %134 = vmatpush1.msra.mxu0 0.0
  %135 = vmatprep.subr.mxu0 0.0
  %136 = vmatpush1.msra.mxu0 0.0
  %137 = vmatprep.subr.mxu0 0.0
  %138 = vmatpush1.msra.mxu0 0.0
  %139 = vmatprep.subr.mxu0 0.0
  %140 = vmatpush1.msra.mxu0 0.0
  %141 = vmatprep.subr.mxu0 0.0
  %142 = vmatpush1.msra.mxu0 0.0
  %143 = vmatprep.subr.mxu0 0.0
  %144 = vmatpush1.msra.mxu0 0.0
  %145 = vmatprep.subr.mxu0 0.0
  %146 = vmatpush1.msra.mxu0 0.0
  %147 = vmatprep.subr.mxu0 0.0
  %148 = vmatpush1.msra.mxu0 0.0
  %149 = vmatprep.subr.mxu0 0.0
  %150 = vmatpush1.msra.mxu0 0.0
  %151 = vmatprep.mubr.f32.mxu0 0.0
  %152 = vmatmul.mubr.f32.gmra.mrb[0].mxu0 %v66
  %v153 = vpop.f32.mrb[0].mxu0
  %v154 = vadd.f32 %v37, %v153
  %v155 = vpop.f32.mrb[0].mxu0
  %156 = vmatprep.mubr.f32.mxu0 0.0
  %157 = vmatmul.mubr.f32.gmra.mrb[0].mxu0 %v69
  %v158 = vpop.f32.mrb[0].mxu0
  %v159 = vadd.f32 %v42, %v158
  %v160 = vpop.f32.mrb[0].mxu0
  %161 = vmatprep.mubr.f32.mxu0 0.0
  %162 = vmatmul.mubr.f32.gmra.mrb[0].mxu0 %v72
  %v163 = vpop.f32.mrb[0].mxu0
  %v164 = vadd.f32 %v47, %v163
  %v165 = vpop.f32.mrb[0].mxu0
  %166 = vmatprep.mubr.f32.mxu0 0.0
  %167 = vmatmul.mubr.f32.gmra.mrb[0].mxu0 %v75
  %v168 = vpop.f32.mrb[0].mxu0
  %v169 = vadd.f32 %v52, %v168
  %v170 = vpop.f32.mrb[0].mxu0
  %171 = vmatprep.mubr.f32.mxu0 0.0
  %172 = vmatmul.mubr.f32.gmra.mrb[0].mxu0 %v78
  %v173 = vpop.f32.mrb[0].mxu0
  %v174 = vadd.f32 %v57, %v173
  %v175 = vpop.f32.mrb[0].mxu0
  %176 = vmatprep.mubr.f32.mxu0 0.0
  %177 = vmatmul.mubr.f32.gmra.mrb[0].mxu0 %v81
  %v178 = vpop.f32.mrb[0].mxu0
  %v179 = vadd.f32 %v62, %v178
  %v180 = vpop.f32.mrb[0].mxu0
  %181 = vdwg.mxu0
  %182 = vst [vmem:[%s3] sm:$0xff] %v154
  %183 = vst [vmem:[%s3 + $0x8] sm:$0xff] %v159
  %184 = vst [vmem:[%s3 + $0x10] sm:$0xff] %v164
  %185 = vst [vmem:[%s3 + $0x18] sm:$0xff] %v169
  %186 = vst [vmem:[%s3 + $0x20] sm:$0xff] %v174
  %187 = vst [vmem:[%s3 + $0x28] sm:$0xff] %v179
  // Predicated region
  $region14: #{rsu4_forward.18} parent=0 // pred_check
    _
  $region15: #{rsu4_forward.18} parent=0 // pred_check_branch
    %189 = sbr.rel (0) target = $region17
  $region16: #{rsu4_forward.18} parent=0 // pred_region
    _
  $region17: #{rsu4_forward.18} parent=0 // pred_fallthru
    _
  // Predicated region
  $region18: #{rsu4_forward.18} parent=0 // pred_check
    _
  $region19: #{rsu4_forward.18} parent=0 // pred_check_branch
    %191 = sbr.rel (0) target = $region21
  $region20: #{rsu4_forward.18} parent=0 // pred_region
    _
  $region21: #{rsu4_forward.18} parent=0 // pred_fallthru
    _

// kernel: rsu4_forward.19
$region0: #{rsu4_forward.19}
  #allocation0 [shape = 'u32[]', space=smem, size = 0x4, offset = 0x4, fixed_abs, tag = 'smem constant byte address 0x4 - core index']
  #allocation1 [shape = 'u32[144,128]{1,0:T(1,128)}', space=vmem, size = 0x12000, scoped, tag = 'internal scratch']
  %s0 = inlined_call_operand.vmem [shape: bf16[3,216], index: 0, kind: input, shape index: {}]
  %s1 = inlined_call_operand.vmem [shape: f32[216,512], index: 1, kind: input, shape index: {}]
  %s2 = inlined_call_operand.vmem [shape: f32[3,1], index: 2, kind: input, shape index: {}]
  %s3 = inlined_call_operand.vmem [shape: f32[3,512], index: 3, kind: input, shape index: {}]
  %s4 = inlined_call_operand.vmem [shape: f32[3,512], index: 4, kind: output, shape index: {}]
  %s5 = sld [smem:[#allocation0]]
  $region72: #{rsu4_forward.19} parent=0
    _
  %s7 = ssub.s32 1, %s5
  %s8 = scalar_select 0, %s7, %s5
  $region1: #{rsu4_forward.19} parent=0
    #allocation2 [shape = 'u8[442368]{0}', space=vmem, size = 0x6c000, scoped, tag = 'input window, operand 1']
    loop: start=0, step=1, limit=4
    $region2: #{rsu4_forward.19} parent=1 // loop_pre_header
      _
    $region3: #{rsu4_forward.19} parent=1 // loop_header
      %s10 = sphi 0, %s14
      %p11 = scmp.ge.s32.totalorder %s10, 4
      %s18 = sphi 0, %s18
      %s20 = sphi 0, %s18
      %s21 = sphi 0, %s20
      %s35 = sphi 0, %s21
      %s41 = sphi 0, %s43
      %s44 = sphi 0, %s41
      %s45 = sphi 0, %s44
      %s61 = sphi 0, %s45
      %s65 = sphi 0, %s65
      %s67 = sphi 0, %s65
      %s68 = sphi 0, %s67
      %s82 = sphi 0, %s68
      %s88 = sphi 0, %s90
      %s91 = sphi 0, %s88
      %s92 = sphi 0, %s91
      %s108 = sphi 0, %s92
      %s114 = sphi 0, %s116
      %s117 = sphi 0, %s114
      %s118 = sphi 0, %s117
      %s134 = sphi 0, %s118
    $region4: #{rsu4_forward.19} parent=1 // loop_header_branch
      %13 = sbr.rel (%p11) target = $region8
    $region5: #{rsu4_forward.19} parent=1 // loop_body
      %s15 = ssub.s32 %s10, 1
      %s16 = ssub.s32 %s10, 2
      %s17 = sadd.s32 %s10, 1
      %s19 = sadd.s32 %s18, 1
      %p22 = scmp.eq.s32.totalorder %s10, 1
      %p23 = scmp.ne.s32.totalorder %s18, %s20
      %p24 = scmp.eq.s32.totalorder %s10, 0
      %p25 = por %p23, %p24
      %p26 = scmp.ne.s32.totalorder %s18, %s20
      %p27 = scmp.eq.s32.totalorder %s15, 1
      %p28 = por %p26, %p27
      %p29 = scmp.ne.s32.totalorder %s20, %s21
      %p30 = scmp.eq.s32.totalorder %s15, 0
      %p31 = por %p29, %p30
      %p32 = scmp.ne.s32.totalorder %s20, %s21
      %p33 = scmp.eq.s32.totalorder %s16, 1
      %p34 = por %p32, %p33
      %p36 = scmp.ne.s32.totalorder %s21, %s35
      %p37 = scmp.eq.s32.totalorder %s16, 0
      %p38 = por %p36, %p37
      %s39 = ssub.s32 %s10, %s17
      %p40 = scmp.eq.s32.totalorder %s39, 0
      %s42 = sadd.s32 %s41, 1
      %s43 = scalar_select %p40, %s41, %s42
      %p46 = pneg %p40
      %p47 = scmp.eq.s32.totalorder %s10, 1
      %p48 = por %p46, %p47
      %p49 = scmp.ne.s32.totalorder %s41, %s44
      %p50 = scmp.eq.s32.totalorder %s10, 0
      %p51 = por %p49, %p50
      %p52 = scmp.ne.s32.totalorder %s41, %s44
      %p53 = scmp.eq.s32.totalorder %s15, 1
      %p54 = por %p52, %p53
      %p55 = scmp.ne.s32.totalorder %s44, %s45
      %p56 = scmp.eq.s32.totalorder %s15, 0
      %p57 = por %p55, %p56
      %p58 = scmp.ne.s32.totalorder %s44, %s45
      %p59 = scmp.eq.s32.totalorder %s16, 1
      %p60 = por %p58, %p59
      %p62 = scmp.ne.s32.totalorder %s45, %s61
      %p63 = scmp.eq.s32.totalorder %s16, 0
      %p64 = por %p62, %p63
      %s66 = sadd.s32 %s65, 1
      %p69 = scmp.eq.s32.totalorder %s10, 1
      %p70 = scmp.ne.s32.totalorder %s65, %s67
      %p71 = scmp.eq.s32.totalorder %s10, 0
      %p72 = por %p70, %p71
      %p73 = scmp.ne.s32.totalorder %s65, %s67
      %p74 = scmp.eq.s32.totalorder %s15, 1
      %p75 = por %p73, %p74
      %p76 = scmp.ne.s32.totalorder %s67, %s68
      %p77 = scmp.eq.s32.totalorder %s15, 0
      %p78 = por %p76, %p77
      %p79 = scmp.ne.s32.totalorder %s67, %s68
      %p80 = scmp.eq.s32.totalorder %s16, 1
      %p81 = por %p79, %p80
      %p83 = scmp.ne.s32.totalorder %s68, %s82
      %p84 = scmp.eq.s32.totalorder %s16, 0
      %p85 = por %p83, %p84
      %s86 = ssub.s32 %s10, %s17
      %p87 = scmp.eq.s32.totalorder %s86, 0
      %s89 = sadd.s32 %s88, 1
      %s90 = scalar_select %p87, %s88, %s89
      %p93 = pneg %p87
      %p94 = scmp.eq.s32.totalorder %s10, 1
      %p95 = por %p93, %p94
      %p96 = scmp.ne.s32.totalorder %s88, %s91
      %p97 = scmp.eq.s32.totalorder %s10, 0
      %p98 = por %p96, %p97
      %p99 = scmp.ne.s32.totalorder %s88, %s91
      %p100 = scmp.eq.s32.totalorder %s15, 1
      %p101 = por %p99, %p100
      %p102 = scmp.ne.s32.totalorder %s91, %s92
      %p103 = scmp.eq.s32.totalorder %s15, 0
      %p104 = por %p102, %p103
      %p105 = scmp.ne.s32.totalorder %s91, %s92
      %p106 = scmp.eq.s32.totalorder %s16, 1
      %p107 = por %p105, %p106
      %p109 = scmp.ne.s32.totalorder %s92, %s108
      %p110 = scmp.eq.s32.totalorder %s16, 0
      %p111 = por %p109, %p110
      %s112 = ssub.s32 %s10, %s17
      %p113 = scmp.eq.s32.totalorder %s112, 0
      %s115 = sadd.s32 %s114, 1
      %s116 = scalar_select %p113, %s114, %s115
      %p119 = pneg %p113
      %p120 = scmp.eq.s32.totalorder %s10, 1
      %p121 = por %p119, %p120
      %p122 = scmp.ne.s32.totalorder %s114, %s117
      %p123 = scmp.eq.s32.totalorder %s10, 0
      %p124 = por %p122, %p123
      %p125 = scmp.ne.s32.totalorder %s114, %s117
      %p126 = scmp.eq.s32.totalorder %s15, 1
      %p127 = por %p125, %p126
      %p128 = scmp.ne.s32.totalorder %s117, %s118
      %p129 = scmp.eq.s32.totalorder %s15, 0
      %p130 = por %p128, %p129
      %p131 = scmp.ne.s32.totalorder %s117, %s118
      %p132 = scmp.eq.s32.totalorder %s16, 1
      %p133 = por %p131, %p132
      %p135 = scmp.ne.s32.totalorder %s118, %s134
      %p136 = scmp.eq.s32.totalorder %s16, 0
      %p137 = por %p135, %p136
      %p138 = scmp.le.s32.totalorder 1, %s10
      %p139 = scmp.lt.s32.totalorder %s10, 3
      %p140 = pnand %p138, %p139
      %p141 = pneg %p140
      // Predicated region
      $region9: #{rsu4_forward.19} parent=5 // pred_check
        _
      $region10: #{rsu4_forward.19} parent=5 // pred_check_branch
        %143 = sbr.rel (%p140) target = $region12
      $region11: #{rsu4_forward.19} parent=5 // pred_region
        %s144 = ssub.s32 %s10, 1
        // Predicated region
        $region13: #{rsu4_forward.19} parent=11 // pred_check
          %p145 = pneg %p31
        $region14: #{rsu4_forward.19} parent=11 // pred_check_branch
          %147 = sbr.rel (%p145) target = $region16
        $region15: #{rsu4_forward.19} parent=11 // pred_region
          _
        $region16: #{rsu4_forward.19} parent=11 // pred_fallthru
          _
        // Predicated region
        $region17: #{rsu4_forward.19} parent=11 // pred_check
          %p148 = pneg %p78
        $region18: #{rsu4_forward.19} parent=11 // pred_check_branch
          %150 = sbr.rel (%p148) target = $region20
        $region19: #{rsu4_forward.19} parent=11 // pred_region
          _
        $region20: #{rsu4_forward.19} parent=11 // pred_fallthru
          _
      $region12: #{rsu4_forward.19} parent=5 // pred_fallthru
        _
      %p151 = scmp.lt.s32.totalorder %s10, 2
      // Predicated region
      $region21: #{rsu4_forward.19} parent=5 // pred_check
        %p152 = pneg %p151
      $region22: #{rsu4_forward.19} parent=5 // pred_check_branch
        %154 = sbr.rel (%p152) target = $region24
      $region23: #{rsu4_forward.19} parent=5 // pred_region
        // Predicated region
        $region25: #{rsu4_forward.19} parent=23 // pred_check
          %p155 = pneg %p51
        $region26: #{rsu4_forward.19} parent=23 // pred_check_branch
          %157 = sbr.rel (%p155) target = $region28
        $region27: #{rsu4_forward.19} parent=23 // pred_region
          %s158 = sand.u32 %s41, 1
          %s159 = sand.u32 %s41, 1
          %s160 = smul.addr %s159, 432
          %s161 = scalar_lea.vmem [#allocation2], %s160
          %s162 = smul.u32 2, %s10
          %s163 = smul.addr %s162, 8
          %s164 = scalar_lea.vmem %s1, %s163
          // Predicated region
          $region29: #{rsu4_forward.19} parent=27 // pred_check
            _
          $region30: #{rsu4_forward.19} parent=27 // pred_check_branch
            %166 = sbr.rel (0) target = $region32
          $region31: #{rsu4_forward.19} parent=27 // pred_region
            // Predicated region
            $region33: #{rsu4_forward.19} parent=31 // pred_check
              _
            $region34: #{rsu4_forward.19} parent=31 // pred_check_branch
              %168 = sbr.rel (0) target = $region36
            $region35: #{rsu4_forward.19} parent=31 // pred_region
              loop: start=0, step=1, limit=1
              $region37: #{rsu4_forward.19} parent=35 // loop_pre_header
                _
              $region38: #{rsu4_forward.19} parent=35 // loop_header
                %s170 = sphi 0, %s174
                %p171 = scmp.ge.s32.totalorder %s170, 1
                %s175 = sphi %s164, %s164
                %s176 = sphi %s161, %s161
              $region39: #{rsu4_forward.19} parent=35 // loop_header_branch
                %173 = sbr.rel (%p171) target = $region43
              $region40: #{rsu4_forward.19} parent=35 // loop_body
                %v177 = vld [vmem:[%s175] sm:$0xff]
                %178 = vst [vmem:[%s176] sm:$0xff] %v177
                %v179 = vld [vmem:[%s175 + $0x8] sm:$0xff]
                %180 = vst [vmem:[%s176 + $0x8] sm:$0xff] %v179
                %v181 = vld [vmem:[%s175 + $0x20] sm:$0xff]
                %182 = vst [vmem:[%s176 + $0x10] sm:$0xff] %v181
                %v183 = vld [vmem:[%s175 + $0x28] sm:$0xff]
                %184 = vst [vmem:[%s176 + $0x18] sm:$0xff] %v183
                %v185 = vld [vmem:[%s175 + $0x40] sm:$0xff]
                %186 = vst [vmem:[%s176 + $0x20] sm:$0xff] %v185
                %v187 = vld [vmem:[%s175 + $0x48] sm:$0xff]
                %188 = vst [vmem:[%s176 + $0x28] sm:$0xff] %v187
                %v189 = vld [vmem:[%s175 + $0x60] sm:$0xff]
                %190 = vst [vmem:[%s176 + $0x30] sm:$0xff] %v189
                %v191 = vld [vmem:[%s175 + $0x68] sm:$0xff]
                %192 = vst [vmem:[%s176 + $0x38] sm:$0xff] %v191
                %v193 = vld [vmem:[%s175 + $0x80] sm:$0xff]
                %194 = vst [vmem:[%s176 + $0x40] sm:$0xff] %v193
                %v195 = vld [vmem:[%s175 + $0x88] sm:$0xff]
                %196 = vst [vmem:[%s176 + $0x48] sm:$0xff] %v195
                %v197 = vld [vmem:[%s175 + $0xa0] sm:$0xff]
                %198 = vst [vmem:[%s176 + $0x50] sm:$0xff] %v197
                %v199 = vld [vmem:[%s175 + $0xa8] sm:$0xff]
                %200 = vst [vmem:[%s176 + $0x58] sm:$0xff] %v199
                %v201 = vld [vmem:[%s175 + $0xc0] sm:$0xff]
                %202 = vst [vmem:[%s176 + $0x60] sm:$0xff] %v201
                %v203 = vld [vmem:[%s175 + $0xc8] sm:$0xff]
                %204 = vst [vmem:[%s176 + $0x68] sm:$0xff] %v203
                %v205 = vld [vmem:[%s175 + $0xe0] sm:$0xff]
                %206 = vst [vmem:[%s176 + $0x70] sm:$0xff] %v205
                %v207 = vld [vmem:[%s175 + $0xe8] sm:$0xff]
                %208 = vst [vmem:[%s176 + $0x78] sm:$0xff] %v207
                %v209 = vld [vmem:[%s175 + $0x100] sm:$0xff]
                %210 = vst [vmem:[%s176 + $0x80] sm:$0xff] %v209
                %v211 = vld [vmem:[%s175 + $0x108] sm:$0xff]
                %212 = vst [vmem:[%s176 + $0x88] sm:$0xff] %v211
                %v213 = vld [vmem:[%s175 + $0x120] sm:$0xff]
                %214 = vst [vmem:[%s176 + $0x90] sm:$0xff] %v213
                %v215 = vld [vmem:[%s175 + $0x128] sm:$0xff]
                %216 = vst [vmem:[%s176 + $0x98] sm:$0xff] %v215
                %v217 = vld [vmem:[%s175 + $0x140] sm:$0xff]
                %218 = vst [vmem:[%s176 + $0xa0] sm:$0xff] %v217
                %v219 = vld [vmem:[%s175 + $0x148] sm:$0xff]
                %220 = vst [vmem:[%s176 + $0xa8] sm:$0xff] %v219
                %v221 = vld [vmem:[%s175 + $0x160] sm:$0xff]
                %222 = vst [vmem:[%s176 + $0xb0] sm:$0xff] %v221
                %v223 = vld [vmem:[%s175 + $0x168] sm:$0xff]
                %224 = vst [vmem:[%s176 + $0xb8] sm:$0xff] %v223
                %v225 = vld [vmem:[%s175 + $0x180] sm:$0xff]
                %226 = vst [vmem:[%s176 + $0xc0] sm:$0xff] %v225
                %v227 = vld [vmem:[%s175 + $0x188] sm:$0xff]
                %228 = vst [vmem:[%s176 + $0xc8] sm:$0xff] %v227
                %v229 = vld [vmem:[%s175 + $0x1a0] sm:$0xff]
                %230 = vst [vmem:[%s176 + $0xd0] sm:$0xff] %v229
                %v231 = vld [vmem:[%s175 + $0x1a8] sm:$0xff]
                %232 = vst [vmem:[%s176 + $0xd8] sm:$0xff] %v231
                %v233 = vld [vmem:[%s175 + $0x1c0] sm:$0xff]
                %234 = vst [vmem:[%s176 + $0xe0] sm:$0xff] %v233
                %v235 = vld [vmem:[%s175 + $0x1c8] sm:$0xff]
                %236 = vst [vmem:[%s176 + $0xe8] sm:$0xff] %v235
                %v237 = vld [vmem:[%s175 + $0x1e0] sm:$0xff]
                %238 = vst [vmem:[%s176 + $0xf0] sm:$0xff] %v237
                %v239 = vld [vmem:[%s175 + $0x1e8] sm:$0xff]
                %240 = vst [vmem:[%s176 + $0xf8] sm:$0xff] %v239
                %v241 = vld [vmem:[%s175 + $0x200] sm:$0xff]
                %242 = vst [vmem:[%s176 + $0x100] sm:$0xff] %v241
                %v243 = vld [vmem:[%s175 + $0x208] sm:$0xff]
                %244 = vst [vmem:[%s176 + $0x108] sm:$0xff] %v243
                %v245 = vld [vmem:[%s175 + $0x220] sm:$0xff]
                %246 = vst [vmem:[%s176 + $0x110] sm:$0xff] %v245
                %v247 = vld [vmem:[%s175 + $0x228] sm:$0xff]
                %248 = vst [vmem:[%s176 + $0x118] sm:$0xff] %v247
                %v249 = vld [vmem:[%s175 + $0x240] sm:$0xff]
                %250 = vst [vmem:[%s176 + $0x120] sm:$0xff] %v249
                %v251 = vld [vmem:[%s175 + $0x248] sm:$0xff]
                %252 = vst [vmem:[%s176 + $0x128] sm:$0xff] %v251
                %v253 = vld [vmem:[%s175 + $0x260] sm:$0xff]
                %254 = vst [vmem:[%s176 + $0x130] sm:$0xff] %v253
                %v255 = vld [vmem:[%s175 + $0x268] sm:$0xff]
                %256 = vst [vmem:[%s176 + $0x138] sm:$0xff] %v255
                %v257 = vld [vmem:[%s175 + $0x280] sm:$0xff]
                %258 = vst [vmem:[%s176 + $0x140] sm:$0xff] %v257
                %v259 = vld [vmem:[%s175 + $0x288] sm:$0xff]
                %260 = vst [vmem:[%s176 + $0x148] sm:$0xff] %v259
                %v261 = vld [vmem:[%s175 + $0x2a0] sm:$0xff]
                %262 = vst [vmem:[%s176 + $0x150] sm:$0xff] %v261
                %v263 = vld [vmem:[%s175 + $0x2a8] sm:$0xff]
                %264 = vst [vmem:[%s176 + $0x158] sm:$0xff] %v263
                %v265 = vld [vmem:[%s175 + $0x2c0] sm:$0xff]
                %266 = vst [vmem:[%s176 + $0x160] sm:$0xff] %v265
                %v267 = vld [vmem:[%s175 + $0x2c8] sm:$0xff]
                %268 = vst [vmem:[%s176 + $0x168] sm:$0xff] %v267
                %v269 = vld [vmem:[%s175 + $0x2e0] sm:$0xff]
                %270 = vst [vmem:[%s176 + $0x170] sm:$0xff] %v269
                %v271 = vld [vmem:[%s175 + $0x2e8] sm:$0xff]
                %272 = vst [vmem:[%s176 + $0x178] sm:$0xff] %v271
                %v273 = vld [vmem:[%s175 + $0x300] sm:$0xff]
                %274 = vst [vmem:[%s176 + $0x180] sm:$0xff] %v273
                %v275 = vld [vmem:[%s175 + $0x308] sm:$0xff]
                %276 = vst [vmem:[%s176 + $0x188] sm:$0xff] %v275
                %v277 = vld [vmem:[%s175 + $0x320] sm:$0xff]
                %278 = vst [vmem:[%s176 + $0x190] sm:$0xff] %v277
                %v279 = vld [vmem:[%s175 + $0x328] sm:$0xff]
                %280 = vst [vmem:[%s176 + $0x198] sm:$0xff] %v279
                %v281 = vld [vmem:[%s175 + $0x340] sm:$0xff]
                %282 = vst [vmem:[%s176 + $0x1a0] sm:$0xff] %v281
                %v283 = vld [vmem:[%s175 + $0x348] sm:$0xff]
                %284 = vst [vmem:[%s176 + $0x1a8] sm:$0xff] %v283
              $region41: #{rsu4_forward.19} parent=35 // loop_footer
                %s174 = sadd.s32 1, %s170
              $region42: #{rsu4_forward.19} parent=35 // loop_footer_branch
                %169 = sbr.rel target = $region38
              $region43: #{rsu4_forward.19} parent=35 // loop_exit
                _
            $region36: #{rsu4_forward.19} parent=31 // pred_fallthru
              _
            // Predicated region
            $region44: #{rsu4_forward.19} parent=31 // pred_check
              _
            $region45: #{rsu4_forward.19} parent=31 // pred_check_branch
              %286 = sbr.rel target = $region47
            $region46: #{rsu4_forward.19} parent=31 // pred_region
              _
            $region47: #{rsu4_forward.19} parent=31 // pred_fallthru
              _
          $region32: #{rsu4_forward.19} parent=27 // pred_fallthru
            _
          %287 = vnop
        $region28: #{rsu4_forward.19} parent=23 // pred_fallthru
          _
        // Predicated region
        $region48: #{rsu4_forward.19} parent=23 // pred_check
          %p288 = pneg %p98
        $region49: #{rsu4_forward.19} parent=23 // pred_check_branch
          %290 = sbr.rel (%p288) target = $region51
        $region50: #{rsu4_forward.19} parent=23 // pred_region
          %s291 = smul.u32 2, %s10
          %p292 = scmp.lt.s32.totalorder %s291, 3
          %s293 = scalar_select %p292, %s291, 3
          %s294 = smul.addr %s293, 4
          %s295 = scalar_lea.vmem %s3, %s294
          %s296 = smul.u32 2, %s10
        $region51: #{rsu4_forward.19} parent=23 // pred_fallthru
          _
      $region24: #{rsu4_forward.19} parent=5 // pred_fallthru
        _
      %p297 = scmp.le.s32.totalorder 1, %s10
      %p298 = scmp.lt.s32.totalorder %s10, 3
      %p299 = pnand %p297, %p298
      %p300 = pneg %p299
      // Predicated region
      $region52: #{rsu4_forward.19} parent=5 // pred_check
        _
      $region53: #{rsu4_forward.19} parent=5 // pred_check_branch
        %302 = sbr.rel (%p299) target = $region55
      $region54: #{rsu4_forward.19} parent=5 // pred_region
        %s303 = ssub.s32 %s10, 1
        %s304 = sand.u32 %s44, 1
        %s305 = sand.u32 %s44, 1
        %s306 = smul.addr %s305, 432
        %s307 = scalar_lea.vmem [#allocation2], %s306
        // Predicated region
        $region56: #{rsu4_forward.19} parent=54 // pred_check
          %p308 = pneg %p57
        $region57: #{rsu4_forward.19} parent=54 // pred_check_branch
          %310 = sbr.rel (%p308) target = $region59
        $region58: #{rsu4_forward.19} parent=54 // pred_region
          _
        $region59: #{rsu4_forward.19} parent=54 // pred_fallthru
          _
        %p311 = pneg %p31
        %p312 = pneg %p28
        %s313 = sand.u32 %s44, 1
        %s314 = sand.u32 %s44, 1
        %s315 = smul.addr %s314, 432
        %s316 = scalar_lea.vmem [#allocation2], %s315
        %p317 = pneg %p57
        %p318 = pneg %p54
        %p319 = pneg %p78
        %p320 = pneg %p75
        %s321 = smul.u32 2, %s15
        %p322 = scmp.lt.s32.totalorder %s321, 3
        %s323 = scalar_select %p322, %s321, 3
        %s324 = smul.addr %s323, 4
        %s325 = scalar_lea.vmem %s3, %s324
        %p326 = pneg %p104
        %p327 = pneg %p101
        %p328 = pneg %p130
        %p329 = pneg %p127
        %s330 = smul.u32 2, %s15
        %p331 = scmp.lt.s32.totalorder %s330, 3
        %s332 = scalar_select %p331, %s330, 3
        %s333 = smul.addr %s332, 4
        %s334 = scalar_lea.vmem %s4, %s333
        %s335 = smul.u32 2, %s15
        %s336 = smul.u32 2, %s15
        %p337 = scmp.lt.s32.totalorder %s336, 3
        %s338 = scalar_select %p337, %s336, 3
        %s339 = smul.addr %s338, 4
        %s340 = scalar_lea.vmem %s3, %s339
        %s341 = smul.u32 2, %s15
        %s342 = smul.u32 2, %s15
        %p343 = scmp.lt.s32.totalorder %s342, 3
        %s344 = scalar_select %p343, %s342, 3
        %s345 = smul.addr %s344, 4
        %s346 = scalar_lea.vmem %s4, %s345
        %s347 = smul.u32 2, %s15
        %v348 = vld [vmem:[%s0] sm:$0xf]
        %v349 = vunpack.c.l.bf16 %v348
        %v350 = vld [vmem:[%s307] sm:$0xff]
        %v351 = vld [vmem:[%s307 + $0x8] sm:$0xff]
        %v352 = vld [vmem:[%s307 + $0x10] sm:$0xff]
        %v353 = vld [vmem:[%s307 + $0x18] sm:$0xff]
        %v354 = vld [vmem:[%s307 + $0x20] sm:$0xff]
        %v355 = vld [vmem:[%s307 + $0x28] sm:$0xff]
        %v356 = vld [vmem:[%s307 + $0x30] sm:$0xff]
        %v357 = vld [vmem:[%s307 + $0x38] sm:$0xff]
        %v358 = vld [vmem:[%s307 + $0x40] sm:$0xff]
        %v359 = vld [vmem:[%s307 + $0x48] sm:$0xff]
        %v360 = vld [vmem:[%s307 + $0x50] sm:$0xff]
        %v361 = vld [vmem:[%s307 + $0x58] sm:$0xff]
        %v362 = vld [vmem:[%s307 + $0x60] sm:$0xff]
        %v363 = vld [vmem:[%s307 + $0x68] sm:$0xff]
        %v364 = vld [vmem:[%s307 + $0x70] sm:$0xff]
        %v365 = vld [vmem:[%s307 + $0x78] sm:$0xff]
        %v366 = vld [vmem:[%s307 + $0x80] sm:$0xff]
        %v367 = vld [vmem:[%s307 + $0x88] sm:$0xff]
        %v368 = vld [vmem:[%s307 + $0x90] sm:$0xff]
        %v369 = vld [vmem:[%s307 + $0x98] sm:$0xff]
        %v370 = vld [vmem:[%s307 + $0xa0] sm:$0xff]
        %v371 = vld [vmem:[%s307 + $0xa8] sm:$0xff]
        %v372 = vld [vmem:[%s307 + $0xb0] sm:$0xff]
        %v373 = vld [vmem:[%s307 + $0xb8] sm:$0xff]
        %v374 = vld [vmem:[%s307 + $0xc0] sm:$0xff]
        %v375 = vld [vmem:[%s307 + $0xc8] sm:$0xff]
        %v376 = vld [vmem:[%s307 + $0xd0] sm:$0xff]
        %v377 = vld [vmem:[%s307 + $0xd8] sm:$0xff]
        %v378 = vld [vmem:[%s307 + $0xe0] sm:$0xff]
        %v379 = vld [vmem:[%s307 + $0xe8] sm:$0xff]
        %v380 = vld [vmem:[%s307 + $0xf0] sm:$0xff]
        %v381 = vld [vmem:[%s307 + $0xf8] sm:$0xff]
        %v382 = vld [vmem:[%s307 + $0x100] sm:$0xff]
        %v383 = vld [vmem:[%s307 + $0x108] sm:$0xff]
        %v384 = vld [vmem:[%s307 + $0x110] sm:$0xff]
        %v385 = vld [vmem:[%s307 + $0x118] sm:$0xff]
        %v386 = vld [vmem:[%s307 + $0x120] sm:$0xff]
        %v387 = vld [vmem:[%s307 + $0x128] sm:$0xff]
        %v388 = vld [vmem:[%s307 + $0x130] sm:$0xff]
        %v389 = vld [vmem:[%s307 + $0x138] sm:$0xff]
        %v390 = vld [vmem:[%s307 + $0x140] sm:$0xff]
        %v391 = vld [vmem:[%s307 + $0x148] sm:$0xff]
        %v392 = vld [vmem:[%s307 + $0x150] sm:$0xff]
        %v393 = vld [vmem:[%s307 + $0x158] sm:$0xff]
        %v394 = vld [vmem:[%s307 + $0x160] sm:$0xff]
        %v395 = vld [vmem:[%s307 + $0x168] sm:$0xff]
        %v396 = vld [vmem:[%s307 + $0x170] sm:$0xff]
        %v397 = vld [vmem:[%s307 + $0x178] sm:$0xff]
        %v398 = vld [vmem:[%s307 + $0x180] sm:$0xff]
        %v399 = vld [vmem:[%s307 + $0x188] sm:$0xff]
        %v400 = vld [vmem:[%s307 + $0x190] sm:$0xff]
        %v401 = vld [vmem:[%s307 + $0x198] sm:$0xff]
        %v402 = vld [vmem:[%s307 + $0x1a0] sm:$0xff]
        %v403 = vld [vmem:[%s307 + $0x1a8] sm:$0xff]
        %v404 = vld [vmem:[%s2] sm:$0x7]
        %406 = vset.pattern.permute.xlu0 0
        %407 = vperm.xlu0 %406, %v404
        %v408 = vpop.permute.xlu0 %407
        %v411 = vcombine.high %v349, %v349
        %vm412 = vcmask 719872
        %v413 = vsel %vm412, %v411, 0
        %415 = vmatprep.subr.mxu0 %v351
        %416 = vmatpush1.msra.mxu0 %v350
        %417 = vmatprep.subr.mxu0 %v353
        %418 = vmatpush1.msra.mxu0 %v352
        %419 = vmatprep.subr.mxu0 %v355
        %420 = vmatpush1.msra.mxu0 %v354
        %421 = vmatprep.subr.mxu0 %v357
        %422 = vmatpush1.msra.mxu0 %v356
        %423 = vmatprep.subr.mxu0 %v359
        %424 = vmatpush1.msra.mxu0 %v358
        %425 = vmatprep.subr.mxu0 %v361
        %426 = vmatpush1.msra.mxu0 %v360
        %427 = vmatprep.subr.mxu0 %v363
        %428 = vmatpush1.msra.mxu0 %v362
        %429 = vmatprep.subr.mxu0 %v365
        %430 = vmatpush1.msra.mxu0 %v364
        %431 = vmatprep.subr.mxu0 %v367
        %432 = vmatpush1.msra.mxu0 %v366
        %433 = vmatprep.subr.mxu0 %v369
        %434 = vmatpush1.msra.mxu0 %v368
        %435 = vmatprep.subr.mxu0 %v371
        %436 = vmatpush1.msra.mxu0 %v370
        %437 = vmatprep.subr.mxu0 %v373
        %438 = vmatpush1.msra.mxu0 %v372
        %439 = vmatprep.subr.mxu0 %v375
        %440 = vmatpush1.msra.mxu0 %v374
        %441 = vmatprep.subr.mxu0 %v377
        %442 = vmatpush1.msra.mxu0 %v376
        %443 = vmatprep.subr.mxu0 %v379
        %444 = vmatpush1.msra.mxu0 %v378
        %445 = vmatprep.subr.mxu0 %v381
        %446 = vmatpush1.msra.mxu0 %v380
        %447 = vmatprep.subr.mxu0 %v383
        %448 = vmatpush1.msra.mxu0 %v382
        %449 = vmatprep.subr.mxu0 %v385
        %450 = vmatpush1.msra.mxu0 %v384
        %451 = vmatprep.subr.mxu0 %v387
        %452 = vmatpush1.msra.mxu0 %v386
        %453 = vmatprep.subr.mxu0 %v389
        %454 = vmatpush1.msra.mxu0 %v388
        %455 = vmatprep.subr.mxu0 %v391
        %456 = vmatpush1.msra.mxu0 %v390
        %457 = vmatprep.subr.mxu0 %v393
        %458 = vmatpush1.msra.mxu0 %v392
        %459 = vmatprep.subr.mxu0 %v395
        %460 = vmatpush1.msra.mxu0 %v394
        %461 = vmatprep.subr.mxu0 %v397
        %462 = vmatpush1.msra.mxu0 %v396
        %463 = vmatprep.subr.mxu0 %v399
        %464 = vmatpush1.msra.mxu0 %v398
        %465 = vmatprep.subr.mxu0 %v401
        %466 = vmatpush1.msra.mxu0 %v400
        %467 = vmatprep.subr.mxu0 %v403
        %468 = vmatpush1.msra.mxu0 %v402
        %469 = vmatprep.subr.mxu0 0.0
        %470 = vmatpush1.msra.mxu0 0.0
        %471 = vmatprep.subr.mxu0 0.0
        %472 = vmatpush1.msra.mxu0 0.0
        %473 = vmatprep.subr.mxu0 0.0
        %474 = vmatpush1.msra.mxu0 0.0
        %475 = vmatprep.subr.mxu0 0.0
        %476 = vmatpush1.msra.mxu0 0.0
        %477 = vmatprep.subr.mxu0 0.0
        %478 = vmatpush1.msra.mxu0 0.0
        %479 = vmatprep.mubr.f32.mxu0 %v413
        %480 = vmatmul.mubr.f32.gmra.mrb[0].mxu0 %v349
        %v481 = vpop.f32.mrb[0].mxu0
        %v482 = vadd.f32 %v408, %v481
        %v483 = vpop.f32.mrb[0].mxu0
        %v484 = vadd.f32 %v408, %v483
        %485 = vdwg.mxu0
        %v486 = vmax.f32 %v482, 0.0
        %v487 = vmax.f32 %v484, 0.0
        %v488 = vld [vmem:[%s340] sm:$0x77]
        %v490 = vcombine.high %v488, %v488
        %v492 = vadd.f32 %v486, %v488
        %v493 = vadd.f32 %v487, %v490
        %v496 = vcombine.low %v492, %v493
        %498 = vst [vmem:[%s346] sm:$0x77] %v496
        %s499 = smul.u32 2, %s15
        %p500 = scmp.lt.s32.totalorder %s499, 3
        %s501 = scalar_select %p500, %s499, 3
        %s502 = smul.addr %s501, 4
        %s503 = scalar_lea.vmem %s4, %s502
        // Predicated region
        $region60: #{rsu4_forward.19} parent=54 // pred_check
          %p504 = pneg %p127
        $region61: #{rsu4_forward.19} parent=54 // pred_check_branch
          %506 = sbr.rel (%p504) target = $region63
        $region62: #{rsu4_forward.19} parent=54 // pred_region
          %s507 = smul.u32 2, %s15
        $region63: #{rsu4_forward.19} parent=54 // pred_fallthru
          _
      $region55: #{rsu4_forward.19} parent=5 // pred_fallthru
        _
      %p508 = scmp.le.s32.totalorder 2, %s10
      // Predicated region
      $region64: #{rsu4_forward.19} parent=5 // pred_check
        %p509 = pneg %p508
      $region65: #{rsu4_forward.19} parent=5 // pred_check_branch
        %511 = sbr.rel (%p509) target = $region67
      $region66: #{rsu4_forward.19} parent=5 // pred_region
        %s512 = ssub.s32 %s10, 2
        // Predicated region
        $region68: #{rsu4_forward.19} parent=66 // pred_check
          %p513 = pneg %p133
        $region69: #{rsu4_forward.19} parent=66 // pred_check_branch
          %515 = sbr.rel (%p513) target = $region71
        $region70: #{rsu4_forward.19} parent=66 // pred_region
          %s516 = smul.u32 2, %s16
          %p517 = scmp.lt.s32.totalorder %s516, 3
          %s518 = scalar_select %p517, %s516, 3
          %s519 = smul.addr %s518, 4
          %s520 = scalar_lea.vmem %s4, %s519
        $region71: #{rsu4_forward.19} parent=66 // pred_fallthru
          _
      $region67: #{rsu4_forward.19} parent=5 // pred_fallthru
        _
    $region6: #{rsu4_forward.19} parent=1 // loop_footer
      %s14 = sadd.s32 1, %s10
    $region7: #{rsu4_forward.19} parent=1 // loop_footer_branch
      %9 = sbr.rel target = $region3
    $region8: #{rsu4_forward.19} parent=1 // loop_exit
      _

</llo_original>
